<compile_context>
chip_gen: v5e
topology: v5e:2x2
jax: 0.10.0
libtpu: 0.0.40
codegen_flags: <defaults>
</compile_context>

<pallas_src>
import jax
import jax.numpy as jnp
from jax.experimental import pallas as pl
from jax.experimental.pallas import tpu as pltpu

LN_EPS = 1e-5
_MiB = 1024 * 1024


def ffn_kernel(x_ref, gamma_ref, beta_ref, w1_ref, b1_ref, w2_ref, b2_ref,
               o_ref, xn_ref, acc_ref):
    # x_ref: (TM, D)          gamma/beta/b2: (1, D) f32
    # w1_ref: (D, TF) bf16    b1_ref: (1, TF) f32
    # w2_ref: (TF, D) bf16
    # o_ref: (TM, D)          xn_ref: (TM, D) f32   acc_ref: (TM, D) f32
    f = pl.program_id(1)
    nf = pl.num_programs(1)

    @pl.when(f == 0)
    def _layernorm():
        # LayerNorm in f32 (biased variance, like nn.LayerNorm); computed once
        # per token tile and cached in f32 scratch (used by every F step and
        # by the residual).
        x = x_ref[...].astype(jnp.float32)
        mean = jnp.mean(x, axis=-1, keepdims=True)
        cen = x - mean
        var = jnp.mean(cen * cen, axis=-1, keepdims=True)
        xn = cen * jax.lax.rsqrt(var + LN_EPS)
        xn_ref[...] = xn * gamma_ref[...] + beta_ref[...]

    xn = xn_ref[...]

    # linear1 slice + relu (relu_dropout is identity in eval mode).
    # bf16 operands on the MXU, f32 accumulation.
    h = jnp.dot(xn.astype(w1_ref.dtype), w1_ref[...],
                preferred_element_type=jnp.float32)
    h = jnp.maximum(h + b1_ref[...], 0.0)

    # partial linear2 (res_dropout is identity in eval mode).
    partial = jnp.dot(h.astype(w2_ref.dtype), w2_ref[...],
                      preferred_element_type=jnp.float32)

    @pl.when(f == 0)
    def _init_acc():
        # Fold the residual (= layernormed x, per the PyTorch module) and the
        # output bias into the first partial: no zero-init / RMW on step 0.
        acc_ref[...] = xn + b2_ref[...] + partial

    @pl.when(f > 0)
    def _accumulate():
        acc_ref[...] += partial

    @pl.when(f == nf - 1)
    def _finalize():
        o_ref[...] = acc_ref[...].astype(o_ref.dtype)


def _round_up(x, m):
    return ((x + m - 1) // m) * m


def _vmem_capacity_bytes():
    """Per-core VMEM capacity; conservative fallback = 64 MiB (v7x per-TC)."""
    try:
        cap = int(pltpu.get_tpu_info().vmem_capacity_bytes)
        return min(max(cap, 32 * _MiB), 128 * _MiB)
    except Exception:
        return 64 * _MiB


def _largest_128_divisor(n, bound):
    """Largest divisor of n that is a multiple of 128 and <= bound (None if none)."""
    best = None
    bound = min(int(bound), n)
    d = 128
    while d <= bound:
        if n % d == 0:
            best = d
        d += 128
    return best


def _choose_tile_m(n_tokens, requested):
    tm = 256 if requested is None else _round_up(int(requested), 32)
    # Don't pad tiny token counts (e.g. decode) all the way up to tm.
    tm = max(32, min(tm, _round_up(n_tokens, 32)))
    # Keep >= 2 token tiles when there is enough work so the "parallel" M axis
    # can be split across TensorCores (v7x megacore).
    if n_tokens > 64 and pl.cdiv(n_tokens, tm) < 2:
        tm = max(32, _round_up(pl.cdiv(n_tokens, 2), 32))
    return tm


def _choose_tile_f(d_model, dim_ff, wbytes, vmem_cap, requested):
    if requested is not None:
        requested = int(requested)
        assert dim_ff % requested == 0, "dim_feedforward must be divisible by tile_f"
        assert requested % 128 == 0 or requested == dim_ff, \
            "tile_f must be a multiple of 128 (or the full dim_feedforward)"
        return requested
    # Full residency (weights single-buffered via pl.Buffered(1)) when both
    # weight matrices fit in roughly half of per-core VMEM.
    if 2 * d_model * dim_ff * wbytes <= 0.55 * vmem_cap:
        return dim_ff
    # Otherwise stream F slices: double-buffered w1+w2 slices should stay
    # under ~40% of VMEM, leaving room for x/out tiles and f32 scratch.
    bound = int(0.40 * vmem_cap) // (2 * 2 * d_model * wbytes)
    tf = _largest_128_divisor(dim_ff, max(bound, 128))
    # No 128-multiple divisor (odd dim_ff): fall back to full residency so the
    # (8,128) BlockSpec constraint is still met.
    return tf if tf is not None else dim_ff


def _vmem_bytes(tile_m, tile_f, d_model, xbytes, obytes, wbytes, w_buf):
    weights = w_buf * 2 * d_model * tile_f * wbytes      # w1 + w2 slices
    b1b = w_buf * max(tile_f, 128) * 4
    io = 2 * tile_m * d_model * (xbytes + obytes)        # x in + y out (double-buffered)
    params = 3 * max(d_model, 128) * 4                   # gamma, beta, b2
    scratch = 2 * tile_m * d_model * 4                   # xn + acc (f32)
    interm = 2 * tile_m * tile_f * 4                     # h / relu temporaries
    return weights + b1b + io + params + scratch + interm


def feed_forward_block(x, gamma, beta, w1, b1, w2, b2, *,
                       tile_m=None, tile_f=None,
                       compute_dtype=jnp.bfloat16):
    """x: (B, S, D).  w1: (D, F), w2: (F, D) -- already transposed vs PyTorch."""
    B, S, D = x.shape
    F_ = w1.shape[1]
    N = B * S

    wbytes = jnp.dtype(compute_dtype).itemsize
    xbytes = jnp.dtype(x.dtype).itemsize
    vmem_cap = _vmem_capacity_bytes()

    tile_m = _choose_tile_m(N, tile_m)
    tile_f = _choose_tile_f(D, F_, wbytes, vmem_cap, tile_f)

    num_m = pl.cdiv(N, tile_m)
    num_f = F_ // tile_f
    n_pad = num_m * tile_m

    x2d = x.reshape(N, D)
    if n_pad != N:
        # Padded rows are normalized / matmul'ed on zeros and sliced off after.
        x2d = jnp.pad(x2d, ((0, n_pad - N), (0, 0)))

    # One-time casts in the wrapper: weights to bf16 (MXU-native, halves the
    # streamed/resident weight bytes), small params to f32 rows.
    w1c = w1.astype(compute_dtype)
    w2c = w2.astype(compute_dtype)
    gamma2 = gamma.reshape(1, D).astype(jnp.float32)
    beta2 = beta.reshape(1, D).astype(jnp.float32)
    b1_2 = b1.reshape(1, F_).astype(jnp.float32)
    b2_2 = b2.reshape(1, D).astype(jnp.float32)

    # Weight-slice buffer depth: single buffer when fully resident (constant
    # block index), 3-deep when streaming and VMEM is roomy (v5e/v6e), else 2.
    if num_f == 1:
        w_buf = 1
    elif _vmem_bytes(tile_m, tile_f, D, xbytes, xbytes, wbytes, 3) <= 0.70 * vmem_cap:
        w_buf = 3
    else:
        w_buf = 2

    est = _vmem_bytes(tile_m, tile_f, D, xbytes, xbytes, wbytes, w_buf)
    vmem_limit = int(max(1.3 * est, 32 * _MiB))
    vmem_limit = min(vmem_limit, int(0.9 * vmem_cap), 128 * _MiB)

    # HBM traffic: weights are re-streamed for every token tile whenever the
    # F axis is actually sliced (their block index changes between token tiles).
    weight_reads = num_m if num_f > 1 else 1
    cost = pl.CostEstimate(
        flops=4 * n_pad * D * F_,                          # two matmuls
        transcendentals=n_pad,                             # rsqrt per token
        bytes_accessed=int(
            n_pad * D * (xbytes + xbytes)                  # x read + y write
            + weight_reads * (w1c.size + w2c.size) * wbytes
            + weight_reads * b1_2.size * 4
            + (gamma2.size + beta2.size + b2_2.size) * 4),
    )

    grid = (num_m, num_f)
    args = (x2d, gamma2, beta2, w1c, b1_2, w2c, b2_2)

    def build(use_buffer_hints):
        def spec(shape, index_map, buffers=None):
            if use_buffer_hints and buffers is not None:
                return pl.BlockSpec(shape, index_map,
                                    pipeline_mode=pl.Buffered(buffers))
            return pl.BlockSpec(shape, index_map)

        return pl.pallas_call(
            ffn_kernel,
            out_shape=jax.ShapeDtypeStruct((n_pad, D), x.dtype),
            grid_spec=pltpu.PrefetchScalarGridSpec(
                num_scalar_prefetch=0,
                grid=grid,
                in_specs=[
                    spec((tile_m, D), lambda i, f: (i, 0)),          # x tile
                    spec((1, D), lambda i, f: (0, 0), 1),            # gamma (resident)
                    spec((1, D), lambda i, f: (0, 0), 1),            # beta  (resident)
                    spec((D, tile_f), lambda i, f: (0, f), w_buf),   # w1 slice
                    spec((1, tile_f), lambda i, f: (0, f), w_buf),   # b1 slice
                    spec((tile_f, D), lambda i, f: (f, 0), w_buf),   # w2 slice
                    spec((1, D), lambda i, f: (0, 0), 1),            # b2 (resident)
                ],
                out_specs=pl.BlockSpec((tile_m, D), lambda i, f: (i, 0)),
                scratch_shapes=[
                    pltpu.VMEM((tile_m, D), jnp.float32),            # cached xn (f32)
                    pltpu.VMEM((tile_m, D), jnp.float32),            # accumulator
                ],
            ),
            compiler_params=pltpu.CompilerParams(
                dimension_semantics=("parallel", "arbitrary"),
                vmem_limit_bytes=vmem_limit,
            ),
            cost_estimate=cost,
        )

    try:
        out = build(True)(*args)
    except Exception:
        # JAX builds without BlockSpec(pipeline_mode=...): fall back to default
        # double-buffered specs (correct, just a little more VMEM).
        out = build(False)(*args)

    return out[:N].reshape(B, S, D)


def init_params(key, d_model, dim_feedforward):
    """Deterministic init mimicking PyTorch defaults (uniform fan-in bounds)."""
    k1, k2, k3, k4 = jax.random.split(key, 4)
    bound1 = 1.0 / jnp.sqrt(d_model)
    bound2 = 1.0 / jnp.sqrt(dim_feedforward)
    # stored as (in, out) so the kernel does x @ W directly
    w1 = jax.random.uniform(k1, (d_model, dim_feedforward), jnp.float32,
                            -bound1, bound1)
    b1 = jax.random.uniform(k2, (dim_feedforward,), jnp.float32, -bound1, bound1)
    w2 = jax.random.uniform(k3, (dim_feedforward, d_model), jnp.float32,
                            -bound2, bound2)
    b2 = jax.random.uniform(k4, (d_model,), jnp.float32, -bound2, bound2)
    gamma = jnp.ones((d_model,), jnp.float32)
    beta = jnp.zeros((d_model,), jnp.float32)
    return gamma, beta, w1, b1, w2, b2


def reference_ffn(x, gamma, beta, w1, b1, w2, b2):
    # Matches the PyTorch module in eval mode: the residual uses layernorm(x)
    # because the module rebinds x = self.layernorm(x) before the add.
    mean = jnp.mean(x, axis=-1, keepdims=True)
    var = jnp.mean((x - mean) ** 2, axis=-1, keepdims=True)
    xn = (x - mean) / jnp.sqrt(var + LN_EPS) * gamma + beta
    h = jnp.maximum(xn @ w1 + b1, 0.0)
    return xn + (h @ w2 + b2)


if __name__ == "__main__":
    batch, seq = 2, 8
    d_model, dim_feedforward = 128, 256

    key = jax.random.PRNGKey(0)
    kx, kp = jax.random.split(key)
    x = jax.random.normal(kx, (batch, seq, d_model), jnp.float32)
    gamma, beta, w1, b1, w2, b2 = init_params(kp, d_model, dim_feedforward)

    out = feed_forward_block(x, gamma, beta, w1, b1, w2, b2)
    out = jax.block_until_ready(out)

    ref = reference_ffn(x, gamma, beta, w1, b1, w2, b2)
    assert out.shape == x.shape
    # bf16 MXU operands with f32 accumulation -> relaxed tolerance vs f32 ref.
    assert jnp.allclose(out, ref, atol=5e-2, rtol=5e-2), "mismatch vs reference"

    print("KERNEL_OK")
</pallas_src>

<mosaic_0001>
module attributes {stable_mosaic.version = 11 : i64} {
  func.func @ffn_kernel(%arg0: i32, %arg1: i32, %arg2: memref<32x128xf32, #tpu.memory_space<vmem>>, %arg3: memref<1x128xf32, #tpu.memory_space<vmem>>, %arg4: memref<1x128xf32, #tpu.memory_space<vmem>>, %arg5: memref<128x256xbf16, #tpu.memory_space<vmem>>, %arg6: memref<1x256xf32, #tpu.memory_space<vmem>>, %arg7: memref<256x128xbf16, #tpu.memory_space<vmem>>, %arg8: memref<1x128xf32, #tpu.memory_space<vmem>>, %arg9: memref<32x128xf32, #tpu.memory_space<vmem>>, %arg10: memref<32x128xf32, #tpu.memory_space<vmem>>, %arg11: memref<32x128xf32, #tpu.memory_space<vmem>>) attributes {dimension_semantics = [#tpu.dimension_semantics<parallel>, #tpu.dimension_semantics<arbitrary>], iteration_bounds = array<i64: 1, 1>, scalar_prefetch = 0 : i64, scratch_operands = 2 : i64, tpu.core_type = #tpu.core_type<tc>, window_params = [{transform_indices = @transform_0, window_bounds = array<i64: 32, 128>}, {pipeline_mode = #tpu.pipeline_mode<synchronous>, transform_indices = @transform_1, window_bounds = array<i64: 1, 128>}, {pipeline_mode = #tpu.pipeline_mode<synchronous>, transform_indices = @transform_2, window_bounds = array<i64: 1, 128>}, {pipeline_mode = #tpu.pipeline_mode<synchronous>, transform_indices = @transform_3, window_bounds = array<i64: 128, 256>}, {pipeline_mode = #tpu.pipeline_mode<synchronous>, transform_indices = @transform_4, window_bounds = array<i64: 1, 256>}, {pipeline_mode = #tpu.pipeline_mode<synchronous>, transform_indices = @transform_5, window_bounds = array<i64: 256, 128>}, {pipeline_mode = #tpu.pipeline_mode<synchronous>, transform_indices = @transform_6, window_bounds = array<i64: 1, 128>}, {transform_indices = @transform_7, window_bounds = array<i64: 32, 128>}]} {
    %c0_i32 = arith.constant 0 : i32
    %0 = arith.cmpi eq, %arg1, %c0_i32 : i32
    %1 = arith.extui %0 : i1 to i32
    %c0_i32_0 = arith.constant 0 : i32
    %2 = arith.cmpi ne, %1, %c0_i32_0 : i32
    scf.if %2 {
      %c0_16 = arith.constant 0 : index
      %c0_17 = arith.constant 0 : index
      %24 = vector.load %arg2[%c0_16, %c0_17] : memref<32x128xf32, #tpu.memory_space<vmem>>, vector<32x128xf32>
      %cst_18 = arith.constant dense<0.000000e+00> : vector<32xf32>
      %25 = vector.multi_reduction <add>, %24, %cst_18 [1] : vector<32x128xf32> to vector<32xf32>
      %26 = vector.shape_cast %25 : vector<32xf32> to vector<32x1xf32>
      %cst_19 = arith.constant 1.280000e+02 : f32
      %27 = vector.broadcast %cst_19 : f32 to vector<32x1xf32>
      %28 = arith.divf %26, %27 : vector<32x1xf32>
      %29 = vector.broadcast %28 : vector<32x1xf32> to vector<32x128xf32>
      %30 = arith.subf %24, %29 : vector<32x128xf32>
      %31 = arith.mulf %30, %30 : vector<32x128xf32>
      %cst_20 = arith.constant dense<0.000000e+00> : vector<32xf32>
      %32 = vector.multi_reduction <add>, %31, %cst_20 [1] : vector<32x128xf32> to vector<32xf32>
      %33 = vector.shape_cast %32 : vector<32xf32> to vector<32x1xf32>
      %cst_21 = arith.constant 1.280000e+02 : f32
      %34 = vector.broadcast %cst_21 : f32 to vector<32x1xf32>
      %35 = arith.divf %33, %34 : vector<32x1xf32>
      %cst_22 = arith.constant 9.99999974E-6 : f32
      %36 = vector.broadcast %cst_22 : f32 to vector<32x1xf32>
      %37 = arith.addf %35, %36 : vector<32x1xf32>
      %38 = math.rsqrt %37 : vector<32x1xf32>
      %39 = vector.broadcast %38 : vector<32x1xf32> to vector<32x128xf32>
      %40 = arith.mulf %30, %39 : vector<32x128xf32>
      %c0_23 = arith.constant 0 : index
      %c0_24 = arith.constant 0 : index
      %41 = vector.load %arg3[%c0_23, %c0_24] : memref<1x128xf32, #tpu.memory_space<vmem>>, vector<1x128xf32>
      %42 = vector.broadcast %41 : vector<1x128xf32> to vector<32x128xf32>
      %43 = arith.mulf %40, %42 : vector<32x128xf32>
      %c0_25 = arith.constant 0 : index
      %c0_26 = arith.constant 0 : index
      %44 = vector.load %arg4[%c0_25, %c0_26] : memref<1x128xf32, #tpu.memory_space<vmem>>, vector<1x128xf32>
      %45 = vector.broadcast %44 : vector<1x128xf32> to vector<32x128xf32>
      %46 = arith.addf %43, %45 : vector<32x128xf32>
      %c0_27 = arith.constant 0 : index
      %c0_28 = arith.constant 0 : index
      %47 = vector.load %arg10[%c0_27, %c0_28] : memref<32x128xf32, #tpu.memory_space<vmem>>, vector<32x128xf32>
      tpu.vector_store %arg10[%c0_27, %c0_28], %46 {strides = array<i32>} : memref<32x128xf32, #tpu.memory_space<vmem>>, vector<32x128xf32>,
    } else {
    }
    %c0 = arith.constant 0 : index
    %c0_1 = arith.constant 0 : index
    %3 = vector.load %arg10[%c0, %c0_1] : memref<32x128xf32, #tpu.memory_space<vmem>>, vector<32x128xf32>
    %4 = arith.truncf %3 : vector<32x128xf32> to vector<32x128xbf16>
    %c0_2 = arith.constant 0 : index
    %c0_3 = arith.constant 0 : index
    %5 = vector.load %arg5[%c0_2, %c0_3] : memref<128x256xbf16, #tpu.memory_space<vmem>>, vector<128x256xbf16>
    %cst = arith.constant dense<0.000000e+00> : vector<32x256xf32>
    %6 = tpu.matmul %4, %5, %cst {dimension_numbers = #tpu.dot_dimension_numbers<[1], [0], [0], [1], [0, 0, 1, 1], [], []>} : vector<32x128xbf16>, vector<128x256xbf16>, vector<32x256xf32> -> vector<32x256xf32>
    %c0_4 = arith.constant 0 : index
    %c0_5 = arith.constant 0 : index
    %7 = vector.load %arg6[%c0_4, %c0_5] : memref<1x256xf32, #tpu.memory_space<vmem>>, vector<1x256xf32>
    %8 = vector.broadcast %7 : vector<1x256xf32> to vector<32x256xf32>
    %9 = arith.addf %6, %8 : vector<32x256xf32>
    %cst_6 = arith.constant 0.000000e+00 : f32
    %10 = vector.broadcast %cst_6 : f32 to vector<32x256xf32>
    %11 = arith.maximumf %9, %10 : vector<32x256xf32>
    %12 = arith.truncf %11 : vector<32x256xf32> to vector<32x256xbf16>
    %c0_7 = arith.constant 0 : index
    %c0_8 = arith.constant 0 : index
    %13 = vector.load %arg7[%c0_7, %c0_8] : memref<256x128xbf16, #tpu.memory_space<vmem>>, vector<256x128xbf16>
    %cst_9 = arith.constant dense<0.000000e+00> : vector<32x128xf32>
    %14 = tpu.matmul %12, %13, %cst_9 {dimension_numbers = #tpu.dot_dimension_numbers<[1], [0], [0], [1], [0, 0, 1, 1], [], []>} : vector<32x256xbf16>, vector<256x128xbf16>, vector<32x128xf32> -> vector<32x128xf32>
    %c0_i32_10 = arith.constant 0 : i32
    %15 = arith.cmpi eq, %arg1, %c0_i32_10 : i32
    %16 = arith.extui %15 : i1 to i32
    %c0_i32_11 = arith.constant 0 : i32
    %17 = arith.cmpi ne, %16, %c0_i32_11 : i32
    scf.if %17 {
      %c0_16 = arith.constant 0 : index
      %c0_17 = arith.constant 0 : index
      %24 = vector.load %arg8[%c0_16, %c0_17] : memref<1x128xf32, #tpu.memory_space<vmem>>, vector<1x128xf32>
      %25 = vector.broadcast %24 : vector<1x128xf32> to vector<32x128xf32>
      %26 = arith.addf %3, %25 : vector<32x128xf32>
      %27 = arith.addf %26, %14 : vector<32x128xf32>
      %c0_18 = arith.constant 0 : index
      %c0_19 = arith.constant 0 : index
      %28 = vector.load %arg11[%c0_18, %c0_19] : memref<32x128xf32, #tpu.memory_space<vmem>>, vector<32x128xf32>
      tpu.vector_store %arg11[%c0_18, %c0_19], %27 {strides = array<i32>} : memref<32x128xf32, #tpu.memory_space<vmem>>, vector<32x128xf32>,
    } else {
    }
    %c0_i32_12 = arith.constant 0 : i32
    %18 = arith.cmpi sgt, %arg1, %c0_i32_12 : i32
    %19 = arith.extui %18 : i1 to i32
    %c0_i32_13 = arith.constant 0 : i32
    %20 = arith.cmpi ne, %19, %c0_i32_13 : i32
    scf.if %20 {
      %c0_16 = arith.constant 0 : index
      %c0_17 = arith.constant 0 : index
      %24 = vector.load %arg11[%c0_16, %c0_17] : memref<32x128xf32, #tpu.memory_space<vmem>>, vector<32x128xf32>
      %25 = arith.addf %24, %14 : vector<32x128xf32>
      %c0_18 = arith.constant 0 : index
      %c0_19 = arith.constant 0 : index
      %26 = vector.load %arg11[%c0_18, %c0_19] : memref<32x128xf32, #tpu.memory_space<vmem>>, vector<32x128xf32>
      tpu.vector_store %arg11[%c0_18, %c0_19], %25 {strides = array<i32>} : memref<32x128xf32, #tpu.memory_space<vmem>>, vector<32x128xf32>,
    } else {
    }
    %c0_i32_14 = arith.constant 0 : i32
    %21 = arith.cmpi eq, %arg1, %c0_i32_14 : i32
    %22 = arith.extui %21 : i1 to i32
    %c0_i32_15 = arith.constant 0 : i32
    %23 = arith.cmpi ne, %22, %c0_i32_15 : i32
    scf.if %23 {
      %c0_16 = arith.constant 0 : index
      %c0_17 = arith.constant 0 : index
      %24 = vector.load %arg11[%c0_16, %c0_17] : memref<32x128xf32, #tpu.memory_space<vmem>>, vector<32x128xf32>
      %c0_18 = arith.constant 0 : index
      %c0_19 = arith.constant 0 : index
      %25 = vector.load %arg9[%c0_18, %c0_19] : memref<32x128xf32, #tpu.memory_space<vmem>>, vector<32x128xf32>
      tpu.vector_store %arg9[%c0_18, %c0_19], %24 {strides = array<i32>} : memref<32x128xf32, #tpu.memory_space<vmem>>, vector<32x128xf32>,
    } else {
    }
    return
  }
  func.func @transform_0(%arg0: i32, %arg1: i32) -> (i32, i32) {
    %c0_i32 = arith.constant 0 : i32
    %c0_i32_0 = arith.constant 0 : i32
    return %arg0, %c0_i32 : i32, i32
  }
  func.func @transform_1(%arg0: i32, %arg1: i32) -> (i32, i32) {
    %c0_i32 = arith.constant 0 : i32
    %c0_i32_0 = arith.constant 0 : i32
    %c0_i32_1 = arith.constant 0 : i32
    return %c0_i32, %c0_i32_0 : i32, i32
  }
  func.func @transform_2(%arg0: i32, %arg1: i32) -> (i32, i32) {
    %c0_i32 = arith.constant 0 : i32
    %c0_i32_0 = arith.constant 0 : i32
    %c0_i32_1 = arith.constant 0 : i32
    return %c0_i32, %c0_i32_0 : i32, i32
  }
  func.func @transform_3(%arg0: i32, %arg1: i32) -> (i32, i32) {
    %c0_i32 = arith.constant 0 : i32
    %c0_i32_0 = arith.constant 0 : i32
    return %c0_i32, %arg1 : i32, i32
  }
  func.func @transform_4(%arg0: i32, %arg1: i32) -> (i32, i32) {
    %c0_i32 = arith.constant 0 : i32
    %c0_i32_0 = arith.constant 0 : i32
    return %c0_i32, %arg1 : i32, i32
  }
  func.func @transform_5(%arg0: i32, %arg1: i32) -> (i32, i32) {
    %c0_i32 = arith.constant 0 : i32
    %c0_i32_0 = arith.constant 0 : i32
    return %arg1, %c0_i32 : i32, i32
  }
  func.func @transform_6(%arg0: i32, %arg1: i32) -> (i32, i32) {
    %c0_i32 = arith.constant 0 : i32
    %c0_i32_0 = arith.constant 0 : i32
    %c0_i32_1 = arith.constant 0 : i32
    return %c0_i32, %c0_i32_0 : i32, i32
  }
  func.func @transform_7(%arg0: i32, %arg1: i32) -> (i32, i32) {
    %c0_i32 = arith.constant 0 : i32
    %c0_i32_0 = arith.constant 0 : i32
    return %arg0, %c0_i32 : i32, i32
  }
}

module attributes {stable_mosaic.version = 11 : i64} {
  func.func @ffn_kernel(%arg0: i32, %arg1: i32, %arg2: memref<32x128xf32, #tpu.memory_space<vmem>>, %arg3: memref<1x128xf32, #tpu.memory_space<vmem>>, %arg4: memref<1x128xf32, #tpu.memory_space<vmem>>, %arg5: memref<128x256xbf16, #tpu.memory_space<vmem>>, %arg6: memref<1x256xf32, #tpu.memory_space<vmem>>, %arg7: memref<256x128xbf16, #tpu.memory_space<vmem>>, %arg8: memref<1x128xf32, #tpu.memory_space<vmem>>, %arg9: memref<32x128xf32, #tpu.memory_space<vmem>>, %arg10: memref<32x128xf32, #tpu.memory_space<vmem>>, %arg11: memref<32x128xf32, #tpu.memory_space<vmem>>) attributes {dimension_semantics = [#tpu.dimension_semantics<parallel>, #tpu.dimension_semantics<arbitrary>], iteration_bounds = array<i64: 1, 1>, scalar_prefetch = 0 : i64, scratch_operands = 2 : i64, tpu.core_type = #tpu.core_type<tc>, window_params = [{transform_indices = @transform_0, window_bounds = array<i64: 32, 128>}, {pipeline_mode = #tpu.pipeline_mode<synchronous>, transform_indices = @transform_1, window_bounds = array<i64: 1, 128>}, {pipeline_mode = #tpu.pipeline_mode<synchronous>, transform_indices = @transform_2, window_bounds = array<i64: 1, 128>}, {transform_indices = @transform_3, window_bounds = array<i64: 128, 256>}, {transform_indices = @transform_4, window_bounds = array<i64: 1, 256>}, {transform_indices = @transform_5, window_bounds = array<i64: 256, 128>}, {pipeline_mode = #tpu.pipeline_mode<synchronous>, transform_indices = @transform_6, window_bounds = array<i64: 1, 128>}, {transform_indices = @transform_7, window_bounds = array<i64: 32, 128>}]} {
    %c0_i32 = arith.constant 0 : i32
    %0 = arith.cmpi eq, %arg1, %c0_i32 : i32
    %1 = arith.extui %0 : i1 to i32
    %c0_i32_0 = arith.constant 0 : i32
    %2 = arith.cmpi ne, %1, %c0_i32_0 : i32
    scf.if %2 {
      %c0_16 = arith.constant 0 : index
      %c0_17 = arith.constant 0 : index
      %24 = vector.load %arg2[%c0_16, %c0_17] : memref<32x128xf32, #tpu.memory_space<vmem>>, vector<32x128xf32>
      %cst_18 = arith.constant dense<0.000000e+00> : vector<32xf32>
      %25 = vector.multi_reduction <add>, %24, %cst_18 [1] : vector<32x128xf32> to vector<32xf32>
      %26 = vector.shape_cast %25 : vector<32xf32> to vector<32x1xf32>
      %cst_19 = arith.constant 1.280000e+02 : f32
      %27 = vector.broadcast %cst_19 : f32 to vector<32x1xf32>
      %28 = arith.divf %26, %27 : vector<32x1xf32>
      %29 = vector.broadcast %28 : vector<32x1xf32> to vector<32x128xf32>
      %30 = arith.subf %24, %29 : vector<32x128xf32>
      %31 = arith.mulf %30, %30 : vector<32x128xf32>
      %cst_20 = arith.constant dense<0.000000e+00> : vector<32xf32>
      %32 = vector.multi_reduction <add>, %31, %cst_20 [1] : vector<32x128xf32> to vector<32xf32>
      %33 = vector.shape_cast %32 : vector<32xf32> to vector<32x1xf32>
      %cst_21 = arith.constant 1.280000e+02 : f32
      %34 = vector.broadcast %cst_21 : f32 to vector<32x1xf32>
      %35 = arith.divf %33, %34 : vector<32x1xf32>
      %cst_22 = arith.constant 9.99999974E-6 : f32
      %36 = vector.broadcast %cst_22 : f32 to vector<32x1xf32>
      %37 = arith.addf %35, %36 : vector<32x1xf32>
      %38 = math.rsqrt %37 : vector<32x1xf32>
      %39 = vector.broadcast %38 : vector<32x1xf32> to vector<32x128xf32>
      %40 = arith.mulf %30, %39 : vector<32x128xf32>
      %c0_23 = arith.constant 0 : index
      %c0_24 = arith.constant 0 : index
      %41 = vector.load %arg3[%c0_23, %c0_24] : memref<1x128xf32, #tpu.memory_space<vmem>>, vector<1x128xf32>
      %42 = vector.broadcast %41 : vector<1x128xf32> to vector<32x128xf32>
      %43 = arith.mulf %40, %42 : vector<32x128xf32>
      %c0_25 = arith.constant 0 : index
      %c0_26 = arith.constant 0 : index
      %44 = vector.load %arg4[%c0_25, %c0_26] : memref<1x128xf32, #tpu.memory_space<vmem>>, vector<1x128xf32>
      %45 = vector.broadcast %44 : vector<1x128xf32> to vector<32x128xf32>
      %46 = arith.addf %43, %45 : vector<32x128xf32>
      %c0_27 = arith.constant 0 : index
      %c0_28 = arith.constant 0 : index
      %47 = vector.load %arg10[%c0_27, %c0_28] : memref<32x128xf32, #tpu.memory_space<vmem>>, vector<32x128xf32>
      tpu.vector_store %arg10[%c0_27, %c0_28], %46 {strides = array<i32>} : memref<32x128xf32, #tpu.memory_space<vmem>>, vector<32x128xf32>,
    } else {
    }
    %c0 = arith.constant 0 : index
    %c0_1 = arith.constant 0 : index
    %3 = vector.load %arg10[%c0, %c0_1] : memref<32x128xf32, #tpu.memory_space<vmem>>, vector<32x128xf32>
    %4 = arith.truncf %3 : vector<32x128xf32> to vector<32x128xbf16>
    %c0_2 = arith.constant 0 : index
    %c0_3 = arith.constant 0 : index
    %5 = vector.load %arg5[%c0_2, %c0_3] : memref<128x256xbf16, #tpu.memory_space<vmem>>, vector<128x256xbf16>
    %cst = arith.constant dense<0.000000e+00> : vector<32x256xf32>
    %6 = tpu.matmul %4, %5, %cst {dimension_numbers = #tpu.dot_dimension_numbers<[1], [0], [0], [1], [0, 0, 1, 1], [], []>} : vector<32x128xbf16>, vector<128x256xbf16>, vector<32x256xf32> -> vector<32x256xf32>
    %c0_4 = arith.constant 0 : index
    %c0_5 = arith.constant 0 : index
    %7 = vector.load %arg6[%c0_4, %c0_5] : memref<1x256xf32, #tpu.memory_space<vmem>>, vector<1x256xf32>
    %8 = vector.broadcast %7 : vector<1x256xf32> to vector<32x256xf32>
    %9 = arith.addf %6, %8 : vector<32x256xf32>
    %cst_6 = arith.constant 0.000000e+00 : f32
    %10 = vector.broadcast %cst_6 : f32 to vector<32x256xf32>
    %11 = arith.maximumf %9, %10 : vector<32x256xf32>
    %12 = arith.truncf %11 : vector<32x256xf32> to vector<32x256xbf16>
    %c0_7 = arith.constant 0 : index
    %c0_8 = arith.constant 0 : index
    %13 = vector.load %arg7[%c0_7, %c0_8] : memref<256x128xbf16, #tpu.memory_space<vmem>>, vector<256x128xbf16>
    %cst_9 = arith.constant dense<0.000000e+00> : vector<32x128xf32>
    %14 = tpu.matmul %12, %13, %cst_9 {dimension_numbers = #tpu.dot_dimension_numbers<[1], [0], [0], [1], [0, 0, 1, 1], [], []>} : vector<32x256xbf16>, vector<256x128xbf16>, vector<32x128xf32> -> vector<32x128xf32>
    %c0_i32_10 = arith.constant 0 : i32
    %15 = arith.cmpi eq, %arg1, %c0_i32_10 : i32
    %16 = arith.extui %15 : i1 to i32
    %c0_i32_11 = arith.constant 0 : i32
    %17 = arith.cmpi ne, %16, %c0_i32_11 : i32
    scf.if %17 {
      %c0_16 = arith.constant 0 : index
      %c0_17 = arith.constant 0 : index
      %24 = vector.load %arg8[%c0_16, %c0_17] : memref<1x128xf32, #tpu.memory_space<vmem>>, vector<1x128xf32>
      %25 = vector.broadcast %24 : vector<1x128xf32> to vector<32x128xf32>
      %26 = arith.addf %3, %25 : vector<32x128xf32>
      %27 = arith.addf %26, %14 : vector<32x128xf32>
      %c0_18 = arith.constant 0 : index
      %c0_19 = arith.constant 0 : index
      %28 = vector.load %arg11[%c0_18, %c0_19] : memref<32x128xf32, #tpu.memory_space<vmem>>, vector<32x128xf32>
      tpu.vector_store %arg11[%c0_18, %c0_19], %27 {strides = array<i32>} : memref<32x128xf32, #tpu.memory_space<vmem>>, vector<32x128xf32>,
    } else {
    }
    %c0_i32_12 = arith.constant 0 : i32
    %18 = arith.cmpi sgt, %arg1, %c0_i32_12 : i32
    %19 = arith.extui %18 : i1 to i32
    %c0_i32_13 = arith.constant 0 : i32
    %20 = arith.cmpi ne, %19, %c0_i32_13 : i32
    scf.if %20 {
      %c0_16 = arith.constant 0 : index
      %c0_17 = arith.constant 0 : index
      %24 = vector.load %arg11[%c0_16, %c0_17] : memref<32x128xf32, #tpu.memory_space<vmem>>, vector<32x128xf32>
      %25 = arith.addf %24, %14 : vector<32x128xf32>
      %c0_18 = arith.constant 0 : index
      %c0_19 = arith.constant 0 : index
      %26 = vector.load %arg11[%c0_18, %c0_19] : memref<32x128xf32, #tpu.memory_space<vmem>>, vector<32x128xf32>
      tpu.vector_store %arg11[%c0_18, %c0_19], %25 {strides = array<i32>} : memref<32x128xf32, #tpu.memory_space<vmem>>, vector<32x128xf32>,
    } else {
    }
    %c0_i32_14 = arith.constant 0 : i32
    %21 = arith.cmpi eq, %arg1, %c0_i32_14 : i32
    %22 = arith.extui %21 : i1 to i32
    %c0_i32_15 = arith.constant 0 : i32
    %23 = arith.cmpi ne, %22, %c0_i32_15 : i32
    scf.if %23 {
      %c0_16 = arith.constant 0 : index
      %c0_17 = arith.constant 0 : index
      %24 = vector.load %arg11[%c0_16, %c0_17] : memref<32x128xf32, #tpu.memory_space<vmem>>, vector<32x128xf32>
      %c0_18 = arith.constant 0 : index
      %c0_19 = arith.constant 0 : index
      %25 = vector.load %arg9[%c0_18, %c0_19] : memref<32x128xf32, #tpu.memory_space<vmem>>, vector<32x128xf32>
      tpu.vector_store %arg9[%c0_18, %c0_19], %24 {strides = array<i32>} : memref<32x128xf32, #tpu.memory_space<vmem>>, vector<32x128xf32>,
    } else {
    }
    return
  }
  func.func @transform_0(%arg0: i32, %arg1: i32) -> (i32, i32) {
    %c0_i32 = arith.constant 0 : i32
    %c0_i32_0 = arith.constant 0 : i32
    return %arg0, %c0_i32 : i32, i32
  }
  func.func @transform_1(%arg0: i32, %arg1: i32) -> (i32, i32) {
    %c0_i32 = arith.constant 0 : i32
    %c0_i32_0 = arith.constant 0 : i32
    %c0_i32_1 = arith.constant 0 : i32
    return %c0_i32, %c0_i32_0 : i32, i32
  }
  func.func @transform_2(%arg0: i32, %arg1: i32) -> (i32, i32) {
    %c0_i32 = arith.constant 0 : i32
    %c0_i32_0 = arith.constant 0 : i32
    %c0_i32_1 = arith.constant 0 : i32
    return %c0_i32, %c0_i32_0 : i32, i32
  }
  func.func @transform_3(%arg0: i32, %arg1: i32) -> (i32, i32) {
    %c0_i32 = arith.constant 0 : i32
    %c0_i32_0 = arith.constant 0 : i32
    return %c0_i32, %arg1 : i32, i32
  }
  func.func @transform_4(%arg0: i32, %arg1: i32) -> (i32, i32) {
    %c0_i32 = arith.constant 0 : i32
    %c0_i32_0 = arith.constant 0 : i32
    return %c0_i32, %arg1 : i32, i32
  }
  func.func @transform_5(%arg0: i32, %arg1: i32) -> (i32, i32) {
    %c0_i32 = arith.constant 0 : i32
    %c0_i32_0 = arith.constant 0 : i32
    return %arg1, %c0_i32 : i32, i32
  }
  func.func @transform_6(%arg0: i32, %arg1: i32) -> (i32, i32) {
    %c0_i32 = arith.constant 0 : i32
    %c0_i32_0 = arith.constant 0 : i32
    %c0_i32_1 = arith.constant 0 : i32
    return %c0_i32, %c0_i32_0 : i32, i32
  }
  func.func @transform_7(%arg0: i32, %arg1: i32) -> (i32, i32) {
    %c0_i32 = arith.constant 0 : i32
    %c0_i32_0 = arith.constant 0 : i32
    return %arg0, %c0_i32 : i32, i32
  }
}

</mosaic_0001>

<llo_original>
// kernel: tpu_custom_call.1
$region0: #{tpu_custom_call.1}
  #allocation0 [shape = 'u32[]', space=smem, size = 0x4, offset = 0x4, fixed_abs, tag = 'smem constant byte address 0x4 - core index']
  #allocation1 [shape = 'u32[72,128]{1,0:T(1,128)}', space=vmem, size = 0x9000, scoped, tag = 'internal scratch']
  #allocation2 [shape = 'f32[32,128]{1,0:T(8,128)}', space=vmem, size = 0x4000, scoped, tag = 'scratch operand']
  #allocation3 [shape = 'f32[32,128]{1,0:T(8,128)}', space=vmem, size = 0x4000, scoped, tag = 'scratch operand']
  %s0 = inlined_call_operand.hbm [shape: f32[32,128], index: 0, kind: input, shape index: {}]
  %s1 = inlined_call_operand.hbm [shape: f32[1,128], index: 1, kind: input, shape index: {}]
  %s2 = inlined_call_operand.vmem [shape: f32[1,128], index: 2, kind: input, shape index: {}]
  %s3 = inlined_call_operand.hbm [shape: bf16[128,256], index: 3, kind: input, shape index: {}]
  %s4 = inlined_call_operand.vmem [shape: f32[1,256], index: 4, kind: input, shape index: {}]
  %s5 = inlined_call_operand.hbm [shape: bf16[256,128], index: 5, kind: input, shape index: {}]
  %s6 = inlined_call_operand.vmem [shape: f32[1,128], index: 6, kind: input, shape index: {}]
  %s7 = inlined_call_operand.hbm [shape: f32[32,128], index: 7, kind: output, shape index: {}]
  %s8 = sld [smem:[#allocation0]]
  $region70: #{tpu_custom_call.1} parent=0
    _
  %s10 = ssub.s32 1, %s8
  %s11 = scalar_select 0, %s10, %s8
  $region1: #{tpu_custom_call.1} parent=0
    #allocation4 [shape = 'u8[16384]{0}', space=vmem, size = 0x4000, scoped, tag = 'input window, operand 0, single buffered']
    #allocation5 [shape = 's32[1]{0}', space=sflag, size = 0x4, scoped, tag = 'scoped memory for tpu_custom_call.1']
    #allocation6 [shape = 's32[1]{0}', space=sflag, size = 0x4, scoped, tag = 'scoped memory for tpu_custom_call.1']
    #allocation7 [shape = 'u8[512]{0}', space=vmem, size = 0x400, scoped, tag = 'input window, operand 1, single buffered']
    #allocation8 [shape = 's32[1]{0}', space=sflag, size = 0x4, scoped, tag = 'scoped memory for tpu_custom_call.1']
    #allocation9 [shape = 'u8[65536]{0}', space=vmem, size = 0x10000, scoped, tag = 'input window, operand 3, single buffered']
    #allocation10 [shape = 'u8[65536]{0}', space=vmem, size = 0x10000, scoped, tag = 'input window, operand 5, single buffered']
    #allocation11 [shape = 's32[1]{0}', space=sflag, size = 0x4, scoped, tag = 'scoped memory for tpu_custom_call.1']
    #allocation12 [shape = 'u8[16384]{0}', space=vmem, size = 0x4000, scoped, tag = 'output window, operand 0, single buffered']
    %12 = vsyncpa [#allocation5], 0
    %13 = vsyncpa [#allocation8], 0
    %14 = vsyncpa [#allocation11], 0
    %15 = vsyncpa [#allocation6], 0
    // Predicated region
    $region2: #{tpu_custom_call.1} parent=1 // pred_check
      _
    $region3: #{tpu_custom_call.1} parent=1 // pred_check_branch
      %17 = sbr.rel (0) target = $region5
    $region4: #{tpu_custom_call.1} parent=1 // pred_region
      %19 = vsyncadd [#allocation5], 0
      %s20 = sshll.u32 %s0, 4
      %s21 = int_to_ptr.hbm [resolvable:$true] %s20
      %s22 = sshll.u32 [#allocation4], 4
      %s23 = int_to_ptr.vmem [resolvable:$true] %s22
      %28 = dma.hbm_to_vmem [thread:$0]  %s21, 512, %s23, [#allocation5], 128, 128, 8
    $region5: #{tpu_custom_call.1} parent=1 // pred_fallthru
      _
    // Predicated region
    $region6: #{tpu_custom_call.1} parent=1 // pred_check
      _
    $region7: #{tpu_custom_call.1} parent=1 // pred_check_branch
      %30 = sbr.rel (0) target = $region9
    $region8: #{tpu_custom_call.1} parent=1 // pred_region
      %32 = vsyncadd [#allocation8], 0
      %s34 = sshll.u32 %s1, 4
      %s35 = int_to_ptr.hbm [resolvable:$true] %s34
      %s36 = sshll.u32 [#allocation7], 4
      %s37 = int_to_ptr.vmem [resolvable:$true] %s36
      %39 = dma.hbm_to_vmem [thread:$0]  %s35, 16, %s37, [#allocation8]
    $region9: #{tpu_custom_call.1} parent=1 // pred_fallthru
      _
    // Predicated region
    $region10: #{tpu_custom_call.1} parent=1 // pred_check
      _
    $region11: #{tpu_custom_call.1} parent=1 // pred_check_branch
      %41 = sbr.rel (0) target = $region13
    $region12: #{tpu_custom_call.1} parent=1 // pred_region
      _
    $region13: #{tpu_custom_call.1} parent=1 // pred_fallthru
      _
    // Predicated region
    $region14: #{tpu_custom_call.1} parent=1 // pred_check
      _
    $region15: #{tpu_custom_call.1} parent=1 // pred_check_branch
      %43 = sbr.rel (0) target = $region17
    $region16: #{tpu_custom_call.1} parent=1 // pred_region
      %45 = vsyncadd [#allocation8], 0
      %s46 = sshll.u32 %s3, 4
      %s47 = int_to_ptr.hbm [resolvable:$true] %s46
      %s48 = sshll.u32 [#allocation9], 4
      %s49 = int_to_ptr.vmem [resolvable:$true] %s48
      %54 = dma.hbm_to_vmem [thread:$0]  %s47, 2048, %s49, [#allocation8], 128, 128, 8
    $region17: #{tpu_custom_call.1} parent=1 // pred_fallthru
      _
    // Predicated region
    $region18: #{tpu_custom_call.1} parent=1 // pred_check
      _
    $region19: #{tpu_custom_call.1} parent=1 // pred_check_branch
      %56 = sbr.rel (0) target = $region21
    $region20: #{tpu_custom_call.1} parent=1 // pred_region
      _
    $region21: #{tpu_custom_call.1} parent=1 // pred_fallthru
      _
    // Predicated region
    $region22: #{tpu_custom_call.1} parent=1 // pred_check
      _
    $region23: #{tpu_custom_call.1} parent=1 // pred_check_branch
      %58 = sbr.rel (0) target = $region25
    $region24: #{tpu_custom_call.1} parent=1 // pred_region
      %60 = vsyncadd [#allocation11], 0
      %s61 = sshll.u32 %s5, 4
      %s62 = int_to_ptr.hbm [resolvable:$true] %s61
      %s63 = sshll.u32 [#allocation10], 4
      %s64 = int_to_ptr.vmem [resolvable:$true] %s63
      %69 = dma.hbm_to_vmem [thread:$0]  %s62, 2048, %s64, [#allocation11], 64, 64, 4
    $region25: #{tpu_custom_call.1} parent=1 // pred_fallthru
      _
    // Predicated region
    $region26: #{tpu_custom_call.1} parent=1 // pred_check
      _
    $region27: #{tpu_custom_call.1} parent=1 // pred_check_branch
      %71 = sbr.rel (0) target = $region29
    $region28: #{tpu_custom_call.1} parent=1 // pred_region
      _
    $region29: #{tpu_custom_call.1} parent=1 // pred_fallthru
      _
    // Predicated region
    $region30: #{tpu_custom_call.1} parent=1 // pred_check
      _
    $region31: #{tpu_custom_call.1} parent=1 // pred_check_branch
      %73 = sbr.rel (0) target = $region33
    $region32: #{tpu_custom_call.1} parent=1 // pred_region
      %75 = dma.done [#allocation5], 512
    $region33: #{tpu_custom_call.1} parent=1 // pred_fallthru
      _
    // Predicated region
    $region34: #{tpu_custom_call.1} parent=1 // pred_check
      _
    $region35: #{tpu_custom_call.1} parent=1 // pred_check_branch
      %77 = sbr.rel (0) target = $region37
    $region36: #{tpu_custom_call.1} parent=1 // pred_region
      %79 = dma.done [#allocation8], 16
    $region37: #{tpu_custom_call.1} parent=1 // pred_fallthru
      _
    // Predicated region
    $region38: #{tpu_custom_call.1} parent=1 // pred_check
      _
    $region39: #{tpu_custom_call.1} parent=1 // pred_check_branch
      %81 = sbr.rel (0) target = $region41
    $region40: #{tpu_custom_call.1} parent=1 // pred_region
      %83 = dma.done [#allocation8], 2048
    $region41: #{tpu_custom_call.1} parent=1 // pred_fallthru
      _
    // Predicated region
    $region42: #{tpu_custom_call.1} parent=1 // pred_check
      _
    $region43: #{tpu_custom_call.1} parent=1 // pred_check_branch
      %85 = sbr.rel (0) target = $region45
    $region44: #{tpu_custom_call.1} parent=1 // pred_region
      %87 = dma.done [#allocation11], 2048
    $region45: #{tpu_custom_call.1} parent=1 // pred_fallthru
      _
    %p88 = scmp.eq.s32.totalorder 0, 0
    // Predicated region
    $region46: #{tpu_custom_call.1} parent=1 // pred_check
      %p89 = pneg %p88
    $region47: #{tpu_custom_call.1} parent=1 // pred_check_branch
      %91 = sbr.rel (%p89) target = $region49
    $region48: #{tpu_custom_call.1} parent=1 // pred_region
      %v92 = vld [vmem:[#allocation4] sm:$0xff]
      %v93 = vld [vmem:[#allocation4 + $0x8] sm:$0xff]
      %v94 = vld [vmem:[#allocation4 + $0x10] sm:$0xff]
      %v95 = vld [vmem:[#allocation4 + $0x18] sm:$0xff]
      %96 = vadd.xlane.f32.xlu0 %v92
      %v97 = vpop.xlane.xlu0 %96
      %98 = vadd.xlane.f32.xlu0 %v93
      %v99 = vpop.xlane.xlu0 %98
      %100 = vadd.xlane.f32.xlu0 %v94
      %v101 = vpop.xlane.xlu0 %100
      %102 = vadd.xlane.f32.xlu0 %v95
      %v103 = vpop.xlane.xlu0 %102
      %v104 = vrcp.pop 128.0
      %v105 = vmul.f32 128.0, %v104
      %v106 = vsub.f32 1.0, %v105
      %v107 = vmul.f32 %v104, %v106
      %v108 = vadd.f32 %v104, %v107
      %vm109 = vweird.f32 %v104
      %v110 = vsel %vm109, %v104, %v108
      %v111 = vmul.f32 %v97, %v110
      %v112 = vmul.f32 %v99, %v110
      %v113 = vmul.f32 %v101, %v110
      %v114 = vmul.f32 %v103, %v110
      %v115 = vsub.f32 %v92, %v111
      %v116 = vsub.f32 %v93, %v112
      %v117 = vsub.f32 %v94, %v113
      %v118 = vsub.f32 %v95, %v114
      %v119 = vmul.f32 %v115, %v115
      %v120 = vmul.f32 %v116, %v116
      %v121 = vmul.f32 %v117, %v117
      %v122 = vmul.f32 %v118, %v118
      %123 = vadd.xlane.f32.xlu0 %v119
      %v124 = vpop.xlane.xlu0 %123
      %125 = vadd.xlane.f32.xlu0 %v120
      %v126 = vpop.xlane.xlu0 %125
      %127 = vadd.xlane.f32.xlu0 %v121
      %v128 = vpop.xlane.xlu0 %127
      %129 = vadd.xlane.f32.xlu0 %v122
      %v130 = vpop.xlane.xlu0 %129
      %v131 = vmul.f32 %v124, %v110
      %v132 = vmul.f32 %v126, %v110
      %v133 = vmul.f32 %v128, %v110
      %v134 = vmul.f32 %v130, %v110
      %v135 = vadd.f32 %v131, 1e-05
      %v136 = vadd.f32 %v132, 1e-05
      %v137 = vadd.f32 %v133, 1e-05
      %v138 = vadd.f32 %v134, 1e-05
      %v139 = vrsqrt.pop %v135
      %v140 = vmul.f32 %v139, %v135
      %v141 = vmul.f32 %v140, %v139
      %v142 = vmul.f32 0.5, %v141
      %v143 = vsub.f32 1.5, %v142
      %v144 = vmul.f32 %v139, %v143
      %vm145 = vweird.f32 %v135
      %vm146 = vweird.f32 %v139
      %vm147 = vmor %vm145, %vm146
      %v148 = vsel %vm147, %v139, %v144
      %v149 = vrsqrt.pop %v136
      %v150 = vmul.f32 %v149, %v136
      %v151 = vmul.f32 %v150, %v149
      %v152 = vmul.f32 0.5, %v151
      %v153 = vsub.f32 1.5, %v152
      %v154 = vmul.f32 %v149, %v153
      %vm155 = vweird.f32 %v136
      %vm156 = vweird.f32 %v149
      %vm157 = vmor %vm155, %vm156
      %v158 = vsel %vm157, %v149, %v154
      %v159 = vrsqrt.pop %v137
      %v160 = vmul.f32 %v159, %v137
      %v161 = vmul.f32 %v160, %v159
      %v162 = vmul.f32 0.5, %v161
      %v163 = vsub.f32 1.5, %v162
      %v164 = vmul.f32 %v159, %v163
      %vm165 = vweird.f32 %v137
      %vm166 = vweird.f32 %v159
      %vm167 = vmor %vm165, %vm166
      %v168 = vsel %vm167, %v159, %v164
      %v169 = vrsqrt.pop %v138
      %v170 = vmul.f32 %v169, %v138
      %v171 = vmul.f32 %v170, %v169
      %v172 = vmul.f32 0.5, %v171
      %v173 = vsub.f32 1.5, %v172
      %v174 = vmul.f32 %v169, %v173
      %vm175 = vweird.f32 %v138
      %vm176 = vweird.f32 %v169
      %vm177 = vmor %vm175, %vm176
      %v178 = vsel %vm177, %v169, %v174
      %v179 = vmul.f32 %v115, %v148
      %v180 = vmul.f32 %v116, %v158
      %v181 = vmul.f32 %v117, %v168
      %v182 = vmul.f32 %v118, %v178
      %v183 = vld [vmem:[#allocation7] sm:$0x1]
      %v185 = vperm.slane %v183, 0
      %v187 = vmul.f32 %v179, %v185
      %v188 = vmul.f32 %v180, %v185
      %v189 = vmul.f32 %v181, %v185
      %v190 = vmul.f32 %v182, %v185
      %v191 = vld [vmem:[%s2] sm:$0x1]
      %v193 = vperm.slane %v191, 0
      %v195 = vadd.f32 %v187, %v193
      %v196 = vadd.f32 %v188, %v193
      %v197 = vadd.f32 %v189, %v193
      %v198 = vadd.f32 %v190, %v193
      %199 = vst [vmem:[#allocation2] sm:$0xff] %v195
      %200 = vst [vmem:[#allocation2 + $0x8] sm:$0xff] %v196
      %201 = vst [vmem:[#allocation2 + $0x10] sm:$0xff] %v197
      %202 = vst [vmem:[#allocation2 + $0x18] sm:$0xff] %v198
    $region49: #{tpu_custom_call.1} parent=1 // pred_fallthru
      _
    %v203 = vld [vmem:[#allocation2] sm:$0xff]
    %v204 = vld [vmem:[#allocation2 + $0x8] sm:$0xff]
    %v205 = vld [vmem:[#allocation2 + $0x10] sm:$0xff]
    %v206 = vld [vmem:[#allocation2 + $0x18] sm:$0xff]
    %v207 = vpack.c.bf16 %v204, %v203
    %v208 = vpack.c.bf16 %v206, %v205
    %v209 = vld [vmem:[#allocation9] sm:$0xff]
    %v210 = vld [vmem:[#allocation9 + $0x8] sm:$0xff]
    %v211 = vld [vmem:[#allocation9 + $0x10] sm:$0xff]
    %v212 = vld [vmem:[#allocation9 + $0x18] sm:$0xff]
    %v213 = vld [vmem:[#allocation9 + $0x20] sm:$0xff]
    %v214 = vld [vmem:[#allocation9 + $0x28] sm:$0xff]
    %v215 = vld [vmem:[#allocation9 + $0x30] sm:$0xff]
    %v216 = vld [vmem:[#allocation9 + $0x38] sm:$0xff]
    %v217 = vld [vmem:[#allocation9 + $0x40] sm:$0xff]
    %v218 = vld [vmem:[#allocation9 + $0x48] sm:$0xff]
    %v219 = vld [vmem:[#allocation9 + $0x50] sm:$0xff]
    %v220 = vld [vmem:[#allocation9 + $0x58] sm:$0xff]
    %v221 = vld [vmem:[#allocation9 + $0x60] sm:$0xff]
    %v222 = vld [vmem:[#allocation9 + $0x68] sm:$0xff]
    %v223 = vld [vmem:[#allocation9 + $0x70] sm:$0xff]
    %v224 = vld [vmem:[#allocation9 + $0x78] sm:$0xff]
    %v225 = vld [vmem:[%s4] sm:$0x3]
    %v227 = vperm.slane %v225, 0
    %v228 = vperm.slane %v225, 1
    %v247 = vunpack.c.l.b16 %v209
    %v248 = vunpack.c.h.b16 %v209
    %v249 = vunpack.c.l.b16 %v210
    %v250 = vunpack.c.h.b16 %v210
    %v251 = vunpack.c.l.b16 %v211
    %v252 = vunpack.c.h.b16 %v211
    %v253 = vunpack.c.l.b16 %v212
    %v254 = vunpack.c.h.b16 %v212
    %v255 = vunpack.c.l.b16 %v213
    %v256 = vunpack.c.h.b16 %v213
    %v257 = vunpack.c.l.b16 %v214
    %v258 = vunpack.c.h.b16 %v214
    %v259 = vunpack.c.l.b16 %v215
    %v260 = vunpack.c.h.b16 %v215
    %v261 = vunpack.c.l.b16 %v216
    %v262 = vunpack.c.h.b16 %v216
    %v263 = vunpack.c.l.b16 %v217
    %v264 = vunpack.c.h.b16 %v217
    %v265 = vunpack.c.l.b16 %v218
    %v266 = vunpack.c.h.b16 %v218
    %v267 = vunpack.c.l.b16 %v219
    %v268 = vunpack.c.h.b16 %v219
    %v269 = vunpack.c.l.b16 %v220
    %v270 = vunpack.c.h.b16 %v220
    %v271 = vunpack.c.l.b16 %v221
    %v272 = vunpack.c.h.b16 %v221
    %v273 = vunpack.c.l.b16 %v222
    %v274 = vunpack.c.h.b16 %v222
    %v275 = vunpack.c.l.b16 %v223
    %v276 = vunpack.c.h.b16 %v223
    %v277 = vunpack.c.l.b16 %v224
    %v278 = vunpack.c.h.b16 %v224
    %v279 = vpack.c.b16 %v249, %v247
    %v280 = vpack.c.b16 %v250, %v248
    %v281 = vpack.c.b16 %v253, %v251
    %v282 = vpack.c.b16 %v254, %v252
    %v283 = vpack.c.b16 %v257, %v255
    %v284 = vpack.c.b16 %v258, %v256
    %v285 = vpack.c.b16 %v261, %v259
    %v286 = vpack.c.b16 %v262, %v260
    %v287 = vpack.c.b16 %v265, %v263
    %v288 = vpack.c.b16 %v266, %v264
    %v289 = vpack.c.b16 %v269, %v267
    %v290 = vpack.c.b16 %v270, %v268
    %v291 = vpack.c.b16 %v273, %v271
    %v292 = vpack.c.b16 %v274, %v272
    %v293 = vpack.c.b16 %v277, %v275
    %v294 = vpack.c.b16 %v278, %v276
    %311 = vmatpush.bf16.msra.mxu0 %v293
    %312 = vmatpush.bf16.msra.mxu0 %v291
    %313 = vmatpush.bf16.msra.mxu0 %v289
    %314 = vmatpush.bf16.msra.mxu0 %v287
    %315 = vmatpush.bf16.msra.mxu0 %v285
    %316 = vmatpush.bf16.msra.mxu0 %v283
    %317 = vmatpush.bf16.msra.mxu0 %v281
    %318 = vmatpush.bf16.msra.mxu0 %v279
    %319 = vmatmul.bf16.gmra.mxu0 %v207
    %v320 = vpop.f32.mrf.mxu0
    %v321 = vadd.f32 %v227, %v320
    %v322 = vpop.f32.mrf.mxu0
    %v323 = vadd.f32 %v227, %v322
    %324 = vmatmul.bf16.gmra.mxu0 %v208
    %v325 = vpop.f32.mrf.mxu0
    %v326 = vadd.f32 %v227, %v325
    %v327 = vpop.f32.mrf.mxu0
    %v328 = vadd.f32 %v227, %v327
    %329 = vdwg.mxu0
    %330 = vmatpush.bf16.msra.mxu0 %v294
    %331 = vmatpush.bf16.msra.mxu0 %v292
    %332 = vmatpush.bf16.msra.mxu0 %v290
    %333 = vmatpush.bf16.msra.mxu0 %v288
    %334 = vmatpush.bf16.msra.mxu0 %v286
    %335 = vmatpush.bf16.msra.mxu0 %v284
    %336 = vmatpush.bf16.msra.mxu0 %v282
    %337 = vmatpush.bf16.msra.mxu0 %v280
    %338 = vmatmul.bf16.gmra.mxu0 %v207
    %v339 = vpop.f32.mrf.mxu0
    %v340 = vadd.f32 %v228, %v339
    %v341 = vpop.f32.mrf.mxu0
    %v342 = vadd.f32 %v228, %v341
    %343 = vmatmul.bf16.gmra.mxu0 %v208
    %v344 = vpop.f32.mrf.mxu0
    %v345 = vadd.f32 %v228, %v344
    %v346 = vpop.f32.mrf.mxu0
    %v347 = vadd.f32 %v228, %v346
    %348 = vdwg.mxu0
    %v349 = vmax.f32 %v321, 0.0
    %v350 = vmax.f32 %v340, 0.0
    %v351 = vmax.f32 %v323, 0.0
    %v352 = vmax.f32 %v342, 0.0
    %v353 = vmax.f32 %v326, 0.0
    %v354 = vmax.f32 %v345, 0.0
    %v355 = vmax.f32 %v328, 0.0
    %v356 = vmax.f32 %v347, 0.0
    %v357 = vpack.c.bf16 %v351, %v349
    %v358 = vpack.c.bf16 %v352, %v350
    %v359 = vpack.c.bf16 %v355, %v353
    %v360 = vpack.c.bf16 %v356, %v354
    %v361 = vld [vmem:[#allocation10] sm:$0xf]
    %v362 = vld [vmem:[#allocation10 + $0x4] sm:$0xf]
    %v363 = vld [vmem:[#allocation10 + $0x8] sm:$0xf]
    %v364 = vld [vmem:[#allocation10 + $0xc] sm:$0xf]
    %v365 = vld [vmem:[#allocation10 + $0x10] sm:$0xf]
    %v366 = vld [vmem:[#allocation10 + $0x14] sm:$0xf]
    %v367 = vld [vmem:[#allocation10 + $0x18] sm:$0xf]
    %v368 = vld [vmem:[#allocation10 + $0x1c] sm:$0xf]
    %v369 = vld [vmem:[#allocation10 + $0x20] sm:$0xf]
    %v370 = vld [vmem:[#allocation10 + $0x24] sm:$0xf]
    %v371 = vld [vmem:[#allocation10 + $0x28] sm:$0xf]
    %v372 = vld [vmem:[#allocation10 + $0x2c] sm:$0xf]
    %v373 = vld [vmem:[#allocation10 + $0x30] sm:$0xf]
    %v374 = vld [vmem:[#allocation10 + $0x34] sm:$0xf]
    %v375 = vld [vmem:[#allocation10 + $0x38] sm:$0xf]
    %v376 = vld [vmem:[#allocation10 + $0x3c] sm:$0xf]
    %v377 = vld [vmem:[#allocation10 + $0x40] sm:$0xf]
    %v378 = vld [vmem:[#allocation10 + $0x44] sm:$0xf]
    %v379 = vld [vmem:[#allocation10 + $0x48] sm:$0xf]
    %v380 = vld [vmem:[#allocation10 + $0x4c] sm:$0xf]
    %v381 = vld [vmem:[#allocation10 + $0x50] sm:$0xf]
    %v382 = vld [vmem:[#allocation10 + $0x54] sm:$0xf]
    %v383 = vld [vmem:[#allocation10 + $0x58] sm:$0xf]
    %v384 = vld [vmem:[#allocation10 + $0x5c] sm:$0xf]
    %v385 = vld [vmem:[#allocation10 + $0x60] sm:$0xf]
    %v386 = vld [vmem:[#allocation10 + $0x64] sm:$0xf]
    %v387 = vld [vmem:[#allocation10 + $0x68] sm:$0xf]
    %v388 = vld [vmem:[#allocation10 + $0x6c] sm:$0xf]
    %v389 = vld [vmem:[#allocation10 + $0x70] sm:$0xf]
    %v390 = vld [vmem:[#allocation10 + $0x74] sm:$0xf]
    %v391 = vld [vmem:[#allocation10 + $0x78] sm:$0xf]
    %v392 = vld [vmem:[#allocation10 + $0x7c] sm:$0xf]
    %v425 = vunpack.c.l.b16 %v361
    %v426 = vunpack.c.l.b16 %v362
    %v427 = vunpack.c.l.b16 %v363
    %v428 = vunpack.c.l.b16 %v364
    %v429 = vunpack.c.l.b16 %v365
    %v430 = vunpack.c.l.b16 %v366
    %v431 = vunpack.c.l.b16 %v367
    %v432 = vunpack.c.l.b16 %v368
    %v433 = vunpack.c.l.b16 %v369
    %v434 = vunpack.c.l.b16 %v370
    %v435 = vunpack.c.l.b16 %v371
    %v436 = vunpack.c.l.b16 %v372
    %v437 = vunpack.c.l.b16 %v373
    %v438 = vunpack.c.l.b16 %v374
    %v439 = vunpack.c.l.b16 %v375
    %v440 = vunpack.c.l.b16 %v376
    %v441 = vunpack.c.l.b16 %v377
    %v442 = vunpack.c.l.b16 %v378
    %v443 = vunpack.c.l.b16 %v379
    %v444 = vunpack.c.l.b16 %v380
    %v445 = vunpack.c.l.b16 %v381
    %v446 = vunpack.c.l.b16 %v382
    %v447 = vunpack.c.l.b16 %v383
    %v448 = vunpack.c.l.b16 %v384
    %v449 = vunpack.c.l.b16 %v385
    %v450 = vunpack.c.l.b16 %v386
    %v451 = vunpack.c.l.b16 %v387
    %v452 = vunpack.c.l.b16 %v388
    %v453 = vunpack.c.l.b16 %v389
    %v454 = vunpack.c.l.b16 %v390
    %v455 = vunpack.c.l.b16 %v391
    %v456 = vunpack.c.l.b16 %v392
    %v457 = vpack.c.b16 %v426, %v425
    %v458 = vpack.c.b16 %v428, %v427
    %v459 = vpack.c.b16 %v430, %v429
    %v460 = vpack.c.b16 %v432, %v431
    %v461 = vpack.c.b16 %v434, %v433
    %v462 = vpack.c.b16 %v436, %v435
    %v463 = vpack.c.b16 %v438, %v437
    %v464 = vpack.c.b16 %v440, %v439
    %v465 = vpack.c.b16 %v442, %v441
    %v466 = vpack.c.b16 %v444, %v443
    %v467 = vpack.c.b16 %v446, %v445
    %v468 = vpack.c.b16 %v448, %v447
    %v469 = vpack.c.b16 %v450, %v449
    %v470 = vpack.c.b16 %v452, %v451
    %v471 = vpack.c.b16 %v454, %v453
    %v472 = vpack.c.b16 %v456, %v455
    %489 = vmatpush.bf16.msra.mxu0 %v464
    %490 = vmatpush.bf16.msra.mxu0 %v463
    %491 = vmatpush.bf16.msra.mxu0 %v462
    %492 = vmatpush.bf16.msra.mxu0 %v461
    %493 = vmatpush.bf16.msra.mxu0 %v460
    %494 = vmatpush.bf16.msra.mxu0 %v459
    %495 = vmatpush.bf16.msra.mxu0 %v458
    %496 = vmatpush.bf16.msra.mxu0 %v457
    %497 = vmatmul.bf16.gmra.mxu0 %v357
    %v498 = vpop.f32.mrf.mxu0
    %v499 = vadd.f32 0.0, %v498
    %v500 = vpop.f32.mrf.mxu0
    %v501 = vadd.f32 0.0, %v500
    %502 = vmatmul.bf16.gmra.mxu0 %v359
    %v503 = vpop.f32.mrf.mxu0
    %v504 = vadd.f32 0.0, %v503
    %v505 = vpop.f32.mrf.mxu0
    %v506 = vadd.f32 0.0, %v505
    %507 = vdwg.mxu0
    %508 = vmatpush.bf16.msra.mxu0 %v472
    %509 = vmatpush.bf16.msra.mxu0 %v471
    %510 = vmatpush.bf16.msra.mxu0 %v470
    %511 = vmatpush.bf16.msra.mxu0 %v469
    %512 = vmatpush.bf16.msra.mxu0 %v468
    %513 = vmatpush.bf16.msra.mxu0 %v467
    %514 = vmatpush.bf16.msra.mxu0 %v466
    %515 = vmatpush.bf16.msra.mxu0 %v465
    %516 = vmatmul.bf16.gmra.mxu0 %v358
    %v517 = vpop.f32.mrf.mxu0
    %v518 = vadd.f32 %v499, %v517
    %v519 = vpop.f32.mrf.mxu0
    %v520 = vadd.f32 %v501, %v519
    %521 = vmatmul.bf16.gmra.mxu0 %v360
    %v522 = vpop.f32.mrf.mxu0
    %v523 = vadd.f32 %v504, %v522
    %v524 = vpop.f32.mrf.mxu0
    %v525 = vadd.f32 %v506, %v524
    %526 = vdwg.mxu0
    // Predicated region
    $region50: #{tpu_custom_call.1} parent=1 // pred_check
      %p527 = pneg %p88
    $region51: #{tpu_custom_call.1} parent=1 // pred_check_branch
      %529 = sbr.rel (%p527) target = $region53
    $region52: #{tpu_custom_call.1} parent=1 // pred_region
      %v530 = vld [vmem:[%s6] sm:$0x1]
      %v532 = vperm.slane %v530, 0
      %v534 = vadd.f32 %v203, %v532
      %v535 = vadd.f32 %v204, %v532
      %v536 = vadd.f32 %v205, %v532
      %v537 = vadd.f32 %v206, %v532
      %v538 = vadd.f32 %v534, %v518
      %v539 = vadd.f32 %v535, %v520
      %v540 = vadd.f32 %v536, %v523
      %v541 = vadd.f32 %v537, %v525
      %542 = vst [vmem:[#allocation3] sm:$0xff] %v538
      %543 = vst [vmem:[#allocation3 + $0x8] sm:$0xff] %v539
      %544 = vst [vmem:[#allocation3 + $0x10] sm:$0xff] %v540
      %545 = vst [vmem:[#allocation3 + $0x18] sm:$0xff] %v541
    $region53: #{tpu_custom_call.1} parent=1 // pred_fallthru
      _
    %p546 = scmp.gt.s32.totalorder 0, 0
    // Predicated region
    $region54: #{tpu_custom_call.1} parent=1 // pred_check
      %p547 = pneg %p546
    $region55: #{tpu_custom_call.1} parent=1 // pred_check_branch
      %549 = sbr.rel (%p547) target = $region57
    $region56: #{tpu_custom_call.1} parent=1 // pred_region
      %v550 = vld [vmem:[#allocation3] sm:$0xff]
      %v551 = vld [vmem:[#allocation3 + $0x8] sm:$0xff]
      %v552 = vld [vmem:[#allocation3 + $0x10] sm:$0xff]
      %v553 = vld [vmem:[#allocation3 + $0x18] sm:$0xff]
      %v554 = vadd.f32 %v550, %v518
      %v555 = vadd.f32 %v551, %v520
      %v556 = vadd.f32 %v552, %v523
      %v557 = vadd.f32 %v553, %v525
      %558 = vst [vmem:[#allocation3] sm:$0xff] %v554
      %559 = vst [vmem:[#allocation3 + $0x8] sm:$0xff] %v555
      %560 = vst [vmem:[#allocation3 + $0x10] sm:$0xff] %v556
      %561 = vst [vmem:[#allocation3 + $0x18] sm:$0xff] %v557
    $region57: #{tpu_custom_call.1} parent=1 // pred_fallthru
      _
    // Predicated region
    $region58: #{tpu_custom_call.1} parent=1 // pred_check
      %p562 = pneg %p88
    $region59: #{tpu_custom_call.1} parent=1 // pred_check_branch
      %564 = sbr.rel (%p562) target = $region61
    $region60: #{tpu_custom_call.1} parent=1 // pred_region
      %v565 = vld [vmem:[#allocation3] sm:$0xff]
      %v566 = vld [vmem:[#allocation3 + $0x8] sm:$0xff]
      %v567 = vld [vmem:[#allocation3 + $0x10] sm:$0xff]
      %v568 = vld [vmem:[#allocation3 + $0x18] sm:$0xff]
      %569 = vst [vmem:[#allocation12] sm:$0xff] %v565
      %570 = vst [vmem:[#allocation12 + $0x8] sm:$0xff] %v566
      %571 = vst [vmem:[#allocation12 + $0x10] sm:$0xff] %v567
      %572 = vst [vmem:[#allocation12 + $0x18] sm:$0xff] %v568
    $region61: #{tpu_custom_call.1} parent=1 // pred_fallthru
      _
    // Predicated region
    $region62: #{tpu_custom_call.1} parent=1 // pred_check
      _
    $region63: #{tpu_custom_call.1} parent=1 // pred_check_branch
      %574 = sbr.rel (0) target = $region65
    $region64: #{tpu_custom_call.1} parent=1 // pred_region
      %576 = vsyncadd [#allocation6], 0
      %s577 = sshll.u32 [#allocation12], 4
      %s578 = int_to_ptr.vmem [resolvable:$true] %s577
      %s579 = sshll.u32 %s7, 4
      %s580 = int_to_ptr.hbm [resolvable:$true] %s579
      %585 = dma.vmem_to_hbm [thread:$0]  %s578, 512, %s580, [#allocation6], 128, 128, 8
    $region65: #{tpu_custom_call.1} parent=1 // pred_fallthru
      _
    // Predicated region
    $region66: #{tpu_custom_call.1} parent=1 // pred_check
      _
    $region67: #{tpu_custom_call.1} parent=1 // pred_check_branch
      %587 = sbr.rel (0) target = $region69
    $region68: #{tpu_custom_call.1} parent=1 // pred_region
      %589 = dma.done [#allocation6], 512
    $region69: #{tpu_custom_call.1} parent=1 // pred_fallthru
      _
    %590 = vsyncpa [#allocation5], 1
    %591 = vsyncpa [#allocation8], 1
    %592 = vsyncpa [#allocation11], 1
    %593 = vsyncpa [#allocation6], 1

// kernel: tpu_custom_call.1
$region0: #{tpu_custom_call.1}
  #allocation0 [shape = 'u32[]', space=smem, size = 0x4, offset = 0x4, fixed_abs, tag = 'smem constant byte address 0x4 - core index']
  #allocation1 [shape = 'u32[72,128]{1,0:T(1,128)}', space=vmem, size = 0x9000, scoped, tag = 'internal scratch']
  #allocation2 [shape = 'f32[32,128]{1,0:T(8,128)}', space=vmem, size = 0x4000, scoped, tag = 'scratch operand']
  #allocation3 [shape = 'f32[32,128]{1,0:T(8,128)}', space=vmem, size = 0x4000, scoped, tag = 'scratch operand']
  %s0 = inlined_call_operand.hbm [shape: f32[32,128], index: 0, kind: input, shape index: {}]
  %s1 = inlined_call_operand.hbm [shape: f32[1,128], index: 1, kind: input, shape index: {}]
  %s2 = inlined_call_operand.vmem [shape: f32[1,128], index: 2, kind: input, shape index: {}]
  %s3 = inlined_call_operand.hbm [shape: bf16[128,256], index: 3, kind: input, shape index: {}]
  %s4 = inlined_call_operand.vmem [shape: f32[1,256], index: 4, kind: input, shape index: {}]
  %s5 = inlined_call_operand.hbm [shape: bf16[256,128], index: 5, kind: input, shape index: {}]
  %s6 = inlined_call_operand.vmem [shape: f32[1,128], index: 6, kind: input, shape index: {}]
  %s7 = inlined_call_operand.hbm [shape: f32[32,128], index: 7, kind: output, shape index: {}]
  %s8 = sld [smem:[#allocation0]]
  $region70: #{tpu_custom_call.1} parent=0
    _
  %s10 = ssub.s32 1, %s8
  %s11 = scalar_select 0, %s10, %s8
  $region1: #{tpu_custom_call.1} parent=0
    #allocation4 [shape = 'u8[16384]{0}', space=vmem, size = 0x4000, scoped, tag = 'input window, operand 0, single buffered']
    #allocation5 [shape = 's32[1]{0}', space=sflag, size = 0x4, scoped, tag = 'scoped memory for tpu_custom_call.1']
    #allocation6 [shape = 's32[1]{0}', space=sflag, size = 0x4, scoped, tag = 'scoped memory for tpu_custom_call.1']
    #allocation7 [shape = 'u8[512]{0}', space=vmem, size = 0x400, scoped, tag = 'input window, operand 1, single buffered']
    #allocation8 [shape = 's32[1]{0}', space=sflag, size = 0x4, scoped, tag = 'scoped memory for tpu_custom_call.1']
    #allocation9 [shape = 'u8[65536]{0}', space=vmem, size = 0x10000, scoped, tag = 'input window, operand 3, single buffered']
    #allocation10 [shape = 'u8[65536]{0}', space=vmem, size = 0x10000, scoped, tag = 'input window, operand 5, single buffered']
    #allocation11 [shape = 's32[1]{0}', space=sflag, size = 0x4, scoped, tag = 'scoped memory for tpu_custom_call.1']
    #allocation12 [shape = 'u8[16384]{0}', space=vmem, size = 0x4000, scoped, tag = 'output window, operand 0, single buffered']
    %12 = vsyncpa [#allocation5], 0
    %13 = vsyncpa [#allocation8], 0
    %14 = vsyncpa [#allocation11], 0
    %15 = vsyncpa [#allocation6], 0
    // Predicated region
    $region2: #{tpu_custom_call.1} parent=1 // pred_check
      _
    $region3: #{tpu_custom_call.1} parent=1 // pred_check_branch
      %17 = sbr.rel (0) target = $region5
    $region4: #{tpu_custom_call.1} parent=1 // pred_region
      %19 = vsyncadd [#allocation5], 0
      %s20 = sshll.u32 %s0, 4
      %s21 = int_to_ptr.hbm [resolvable:$true] %s20
      %s22 = sshll.u32 [#allocation4], 4
      %s23 = int_to_ptr.vmem [resolvable:$true] %s22
      %28 = dma.hbm_to_vmem [thread:$0]  %s21, 512, %s23, [#allocation5], 128, 128, 8
    $region5: #{tpu_custom_call.1} parent=1 // pred_fallthru
      _
    // Predicated region
    $region6: #{tpu_custom_call.1} parent=1 // pred_check
      _
    $region7: #{tpu_custom_call.1} parent=1 // pred_check_branch
      %30 = sbr.rel (0) target = $region9
    $region8: #{tpu_custom_call.1} parent=1 // pred_region
      %32 = vsyncadd [#allocation8], 0
      %s34 = sshll.u32 %s1, 4
      %s35 = int_to_ptr.hbm [resolvable:$true] %s34
      %s36 = sshll.u32 [#allocation7], 4
      %s37 = int_to_ptr.vmem [resolvable:$true] %s36
      %39 = dma.hbm_to_vmem [thread:$0]  %s35, 16, %s37, [#allocation8]
    $region9: #{tpu_custom_call.1} parent=1 // pred_fallthru
      _
    // Predicated region
    $region10: #{tpu_custom_call.1} parent=1 // pred_check
      _
    $region11: #{tpu_custom_call.1} parent=1 // pred_check_branch
      %41 = sbr.rel (0) target = $region13
    $region12: #{tpu_custom_call.1} parent=1 // pred_region
      _
    $region13: #{tpu_custom_call.1} parent=1 // pred_fallthru
      _
    // Predicated region
    $region14: #{tpu_custom_call.1} parent=1 // pred_check
      _
    $region15: #{tpu_custom_call.1} parent=1 // pred_check_branch
      %43 = sbr.rel (0) target = $region17
    $region16: #{tpu_custom_call.1} parent=1 // pred_region
      %45 = vsyncadd [#allocation8], 0
      %s46 = sshll.u32 %s3, 4
      %s47 = int_to_ptr.hbm [resolvable:$true] %s46
      %s48 = sshll.u32 [#allocation9], 4
      %s49 = int_to_ptr.vmem [resolvable:$true] %s48
      %54 = dma.hbm_to_vmem [thread:$0]  %s47, 2048, %s49, [#allocation8], 128, 128, 8
    $region17: #{tpu_custom_call.1} parent=1 // pred_fallthru
      _
    // Predicated region
    $region18: #{tpu_custom_call.1} parent=1 // pred_check
      _
    $region19: #{tpu_custom_call.1} parent=1 // pred_check_branch
      %56 = sbr.rel (0) target = $region21
    $region20: #{tpu_custom_call.1} parent=1 // pred_region
      _
    $region21: #{tpu_custom_call.1} parent=1 // pred_fallthru
      _
    // Predicated region
    $region22: #{tpu_custom_call.1} parent=1 // pred_check
      _
    $region23: #{tpu_custom_call.1} parent=1 // pred_check_branch
      %58 = sbr.rel (0) target = $region25
    $region24: #{tpu_custom_call.1} parent=1 // pred_region
      %60 = vsyncadd [#allocation11], 0
      %s61 = sshll.u32 %s5, 4
      %s62 = int_to_ptr.hbm [resolvable:$true] %s61
      %s63 = sshll.u32 [#allocation10], 4
      %s64 = int_to_ptr.vmem [resolvable:$true] %s63
      %69 = dma.hbm_to_vmem [thread:$0]  %s62, 2048, %s64, [#allocation11], 64, 64, 4
    $region25: #{tpu_custom_call.1} parent=1 // pred_fallthru
      _
    // Predicated region
    $region26: #{tpu_custom_call.1} parent=1 // pred_check
      _
    $region27: #{tpu_custom_call.1} parent=1 // pred_check_branch
      %71 = sbr.rel (0) target = $region29
    $region28: #{tpu_custom_call.1} parent=1 // pred_region
      _
    $region29: #{tpu_custom_call.1} parent=1 // pred_fallthru
      _
    // Predicated region
    $region30: #{tpu_custom_call.1} parent=1 // pred_check
      _
    $region31: #{tpu_custom_call.1} parent=1 // pred_check_branch
      %73 = sbr.rel (0) target = $region33
    $region32: #{tpu_custom_call.1} parent=1 // pred_region
      %75 = dma.done [#allocation5], 512
    $region33: #{tpu_custom_call.1} parent=1 // pred_fallthru
      _
    // Predicated region
    $region34: #{tpu_custom_call.1} parent=1 // pred_check
      _
    $region35: #{tpu_custom_call.1} parent=1 // pred_check_branch
      %77 = sbr.rel (0) target = $region37
    $region36: #{tpu_custom_call.1} parent=1 // pred_region
      %79 = dma.done [#allocation8], 16
    $region37: #{tpu_custom_call.1} parent=1 // pred_fallthru
      _
    // Predicated region
    $region38: #{tpu_custom_call.1} parent=1 // pred_check
      _
    $region39: #{tpu_custom_call.1} parent=1 // pred_check_branch
      %81 = sbr.rel (0) target = $region41
    $region40: #{tpu_custom_call.1} parent=1 // pred_region
      %83 = dma.done [#allocation8], 2048
    $region41: #{tpu_custom_call.1} parent=1 // pred_fallthru
      _
    // Predicated region
    $region42: #{tpu_custom_call.1} parent=1 // pred_check
      _
    $region43: #{tpu_custom_call.1} parent=1 // pred_check_branch
      %85 = sbr.rel (0) target = $region45
    $region44: #{tpu_custom_call.1} parent=1 // pred_region
      %87 = dma.done [#allocation11], 2048
    $region45: #{tpu_custom_call.1} parent=1 // pred_fallthru
      _
    %p88 = scmp.eq.s32.totalorder 0, 0
    // Predicated region
    $region46: #{tpu_custom_call.1} parent=1 // pred_check
      %p89 = pneg %p88
    $region47: #{tpu_custom_call.1} parent=1 // pred_check_branch
      %91 = sbr.rel (%p89) target = $region49
    $region48: #{tpu_custom_call.1} parent=1 // pred_region
      %v92 = vld [vmem:[#allocation4] sm:$0xff]
      %v93 = vld [vmem:[#allocation4 + $0x8] sm:$0xff]
      %v94 = vld [vmem:[#allocation4 + $0x10] sm:$0xff]
      %v95 = vld [vmem:[#allocation4 + $0x18] sm:$0xff]
      %96 = vadd.xlane.f32.xlu0 %v92
      %v97 = vpop.xlane.xlu0 %96
      %98 = vadd.xlane.f32.xlu0 %v93
      %v99 = vpop.xlane.xlu0 %98
      %100 = vadd.xlane.f32.xlu0 %v94
      %v101 = vpop.xlane.xlu0 %100
      %102 = vadd.xlane.f32.xlu0 %v95
      %v103 = vpop.xlane.xlu0 %102
      %v104 = vrcp.pop 128.0
      %v105 = vmul.f32 128.0, %v104
      %v106 = vsub.f32 1.0, %v105
      %v107 = vmul.f32 %v104, %v106
      %v108 = vadd.f32 %v104, %v107
      %vm109 = vweird.f32 %v104
      %v110 = vsel %vm109, %v104, %v108
      %v111 = vmul.f32 %v97, %v110
      %v112 = vmul.f32 %v99, %v110
      %v113 = vmul.f32 %v101, %v110
      %v114 = vmul.f32 %v103, %v110
      %v115 = vsub.f32 %v92, %v111
      %v116 = vsub.f32 %v93, %v112
      %v117 = vsub.f32 %v94, %v113
      %v118 = vsub.f32 %v95, %v114
      %v119 = vmul.f32 %v115, %v115
      %v120 = vmul.f32 %v116, %v116
      %v121 = vmul.f32 %v117, %v117
      %v122 = vmul.f32 %v118, %v118
      %123 = vadd.xlane.f32.xlu0 %v119
      %v124 = vpop.xlane.xlu0 %123
      %125 = vadd.xlane.f32.xlu0 %v120
      %v126 = vpop.xlane.xlu0 %125
      %127 = vadd.xlane.f32.xlu0 %v121
      %v128 = vpop.xlane.xlu0 %127
      %129 = vadd.xlane.f32.xlu0 %v122
      %v130 = vpop.xlane.xlu0 %129
      %v131 = vmul.f32 %v124, %v110
      %v132 = vmul.f32 %v126, %v110
      %v133 = vmul.f32 %v128, %v110
      %v134 = vmul.f32 %v130, %v110
      %v135 = vadd.f32 %v131, 1e-05
      %v136 = vadd.f32 %v132, 1e-05
      %v137 = vadd.f32 %v133, 1e-05
      %v138 = vadd.f32 %v134, 1e-05
      %v139 = vrsqrt.pop %v135
      %v140 = vmul.f32 %v139, %v135
      %v141 = vmul.f32 %v140, %v139
      %v142 = vmul.f32 0.5, %v141
      %v143 = vsub.f32 1.5, %v142
      %v144 = vmul.f32 %v139, %v143
      %vm145 = vweird.f32 %v135
      %vm146 = vweird.f32 %v139
      %vm147 = vmor %vm145, %vm146
      %v148 = vsel %vm147, %v139, %v144
      %v149 = vrsqrt.pop %v136
      %v150 = vmul.f32 %v149, %v136
      %v151 = vmul.f32 %v150, %v149
      %v152 = vmul.f32 0.5, %v151
      %v153 = vsub.f32 1.5, %v152
      %v154 = vmul.f32 %v149, %v153
      %vm155 = vweird.f32 %v136
      %vm156 = vweird.f32 %v149
      %vm157 = vmor %vm155, %vm156
      %v158 = vsel %vm157, %v149, %v154
      %v159 = vrsqrt.pop %v137
      %v160 = vmul.f32 %v159, %v137
      %v161 = vmul.f32 %v160, %v159
      %v162 = vmul.f32 0.5, %v161
      %v163 = vsub.f32 1.5, %v162
      %v164 = vmul.f32 %v159, %v163
      %vm165 = vweird.f32 %v137
      %vm166 = vweird.f32 %v159
      %vm167 = vmor %vm165, %vm166
      %v168 = vsel %vm167, %v159, %v164
      %v169 = vrsqrt.pop %v138
      %v170 = vmul.f32 %v169, %v138
      %v171 = vmul.f32 %v170, %v169
      %v172 = vmul.f32 0.5, %v171
      %v173 = vsub.f32 1.5, %v172
      %v174 = vmul.f32 %v169, %v173
      %vm175 = vweird.f32 %v138
      %vm176 = vweird.f32 %v169
      %vm177 = vmor %vm175, %vm176
      %v178 = vsel %vm177, %v169, %v174
      %v179 = vmul.f32 %v115, %v148
      %v180 = vmul.f32 %v116, %v158
      %v181 = vmul.f32 %v117, %v168
      %v182 = vmul.f32 %v118, %v178
      %v183 = vld [vmem:[#allocation7] sm:$0x1]
      %v185 = vperm.slane %v183, 0
      %v187 = vmul.f32 %v179, %v185
      %v188 = vmul.f32 %v180, %v185
      %v189 = vmul.f32 %v181, %v185
      %v190 = vmul.f32 %v182, %v185
      %v191 = vld [vmem:[%s2] sm:$0x1]
      %v193 = vperm.slane %v191, 0
      %v195 = vadd.f32 %v187, %v193
      %v196 = vadd.f32 %v188, %v193
      %v197 = vadd.f32 %v189, %v193
      %v198 = vadd.f32 %v190, %v193
      %199 = vst [vmem:[#allocation2] sm:$0xff] %v195
      %200 = vst [vmem:[#allocation2 + $0x8] sm:$0xff] %v196
      %201 = vst [vmem:[#allocation2 + $0x10] sm:$0xff] %v197
      %202 = vst [vmem:[#allocation2 + $0x18] sm:$0xff] %v198
    $region49: #{tpu_custom_call.1} parent=1 // pred_fallthru
      _
    %v203 = vld [vmem:[#allocation2] sm:$0xff]
    %v204 = vld [vmem:[#allocation2 + $0x8] sm:$0xff]
    %v205 = vld [vmem:[#allocation2 + $0x10] sm:$0xff]
    %v206 = vld [vmem:[#allocation2 + $0x18] sm:$0xff]
    %v207 = vpack.c.bf16 %v204, %v203
    %v208 = vpack.c.bf16 %v206, %v205
    %v209 = vld [vmem:[#allocation9] sm:$0xff]
    %v210 = vld [vmem:[#allocation9 + $0x8] sm:$0xff]
    %v211 = vld [vmem:[#allocation9 + $0x10] sm:$0xff]
    %v212 = vld [vmem:[#allocation9 + $0x18] sm:$0xff]
    %v213 = vld [vmem:[#allocation9 + $0x20] sm:$0xff]
    %v214 = vld [vmem:[#allocation9 + $0x28] sm:$0xff]
    %v215 = vld [vmem:[#allocation9 + $0x30] sm:$0xff]
    %v216 = vld [vmem:[#allocation9 + $0x38] sm:$0xff]
    %v217 = vld [vmem:[#allocation9 + $0x40] sm:$0xff]
    %v218 = vld [vmem:[#allocation9 + $0x48] sm:$0xff]
    %v219 = vld [vmem:[#allocation9 + $0x50] sm:$0xff]
    %v220 = vld [vmem:[#allocation9 + $0x58] sm:$0xff]
    %v221 = vld [vmem:[#allocation9 + $0x60] sm:$0xff]
    %v222 = vld [vmem:[#allocation9 + $0x68] sm:$0xff]
    %v223 = vld [vmem:[#allocation9 + $0x70] sm:$0xff]
    %v224 = vld [vmem:[#allocation9 + $0x78] sm:$0xff]
    %v225 = vld [vmem:[%s4] sm:$0x3]
    %v227 = vperm.slane %v225, 0
    %v228 = vperm.slane %v225, 1
    %v247 = vunpack.c.l.b16 %v209
    %v248 = vunpack.c.h.b16 %v209
    %v249 = vunpack.c.l.b16 %v210
    %v250 = vunpack.c.h.b16 %v210
    %v251 = vunpack.c.l.b16 %v211
    %v252 = vunpack.c.h.b16 %v211
    %v253 = vunpack.c.l.b16 %v212
    %v254 = vunpack.c.h.b16 %v212
    %v255 = vunpack.c.l.b16 %v213
    %v256 = vunpack.c.h.b16 %v213
    %v257 = vunpack.c.l.b16 %v214
    %v258 = vunpack.c.h.b16 %v214
    %v259 = vunpack.c.l.b16 %v215
    %v260 = vunpack.c.h.b16 %v215
    %v261 = vunpack.c.l.b16 %v216
    %v262 = vunpack.c.h.b16 %v216
    %v263 = vunpack.c.l.b16 %v217
    %v264 = vunpack.c.h.b16 %v217
    %v265 = vunpack.c.l.b16 %v218
    %v266 = vunpack.c.h.b16 %v218
    %v267 = vunpack.c.l.b16 %v219
    %v268 = vunpack.c.h.b16 %v219
    %v269 = vunpack.c.l.b16 %v220
    %v270 = vunpack.c.h.b16 %v220
    %v271 = vunpack.c.l.b16 %v221
    %v272 = vunpack.c.h.b16 %v221
    %v273 = vunpack.c.l.b16 %v222
    %v274 = vunpack.c.h.b16 %v222
    %v275 = vunpack.c.l.b16 %v223
    %v276 = vunpack.c.h.b16 %v223
    %v277 = vunpack.c.l.b16 %v224
    %v278 = vunpack.c.h.b16 %v224
    %v279 = vpack.c.b16 %v249, %v247
    %v280 = vpack.c.b16 %v250, %v248
    %v281 = vpack.c.b16 %v253, %v251
    %v282 = vpack.c.b16 %v254, %v252
    %v283 = vpack.c.b16 %v257, %v255
    %v284 = vpack.c.b16 %v258, %v256
    %v285 = vpack.c.b16 %v261, %v259
    %v286 = vpack.c.b16 %v262, %v260
    %v287 = vpack.c.b16 %v265, %v263
    %v288 = vpack.c.b16 %v266, %v264
    %v289 = vpack.c.b16 %v269, %v267
    %v290 = vpack.c.b16 %v270, %v268
    %v291 = vpack.c.b16 %v273, %v271
    %v292 = vpack.c.b16 %v274, %v272
    %v293 = vpack.c.b16 %v277, %v275
    %v294 = vpack.c.b16 %v278, %v276
    %311 = vmatpush.bf16.msra.mxu0 %v293
    %312 = vmatpush.bf16.msra.mxu0 %v291
    %313 = vmatpush.bf16.msra.mxu0 %v289
    %314 = vmatpush.bf16.msra.mxu0 %v287
    %315 = vmatpush.bf16.msra.mxu0 %v285
    %316 = vmatpush.bf16.msra.mxu0 %v283
    %317 = vmatpush.bf16.msra.mxu0 %v281
    %318 = vmatpush.bf16.msra.mxu0 %v279
    %319 = vmatmul.bf16.gmra.mxu0 %v207
    %v320 = vpop.f32.mrf.mxu0
    %v321 = vadd.f32 %v227, %v320
    %v322 = vpop.f32.mrf.mxu0
    %v323 = vadd.f32 %v227, %v322
    %324 = vmatmul.bf16.gmra.mxu0 %v208
    %v325 = vpop.f32.mrf.mxu0
    %v326 = vadd.f32 %v227, %v325
    %v327 = vpop.f32.mrf.mxu0
    %v328 = vadd.f32 %v227, %v327
    %329 = vdwg.mxu0
    %330 = vmatpush.bf16.msra.mxu0 %v294
    %331 = vmatpush.bf16.msra.mxu0 %v292
    %332 = vmatpush.bf16.msra.mxu0 %v290
    %333 = vmatpush.bf16.msra.mxu0 %v288
    %334 = vmatpush.bf16.msra.mxu0 %v286
    %335 = vmatpush.bf16.msra.mxu0 %v284
    %336 = vmatpush.bf16.msra.mxu0 %v282
    %337 = vmatpush.bf16.msra.mxu0 %v280
    %338 = vmatmul.bf16.gmra.mxu0 %v207
    %v339 = vpop.f32.mrf.mxu0
    %v340 = vadd.f32 %v228, %v339
    %v341 = vpop.f32.mrf.mxu0
    %v342 = vadd.f32 %v228, %v341
    %343 = vmatmul.bf16.gmra.mxu0 %v208
    %v344 = vpop.f32.mrf.mxu0
    %v345 = vadd.f32 %v228, %v344
    %v346 = vpop.f32.mrf.mxu0
    %v347 = vadd.f32 %v228, %v346
    %348 = vdwg.mxu0
    %v349 = vmax.f32 %v321, 0.0
    %v350 = vmax.f32 %v340, 0.0
    %v351 = vmax.f32 %v323, 0.0
    %v352 = vmax.f32 %v342, 0.0
    %v353 = vmax.f32 %v326, 0.0
    %v354 = vmax.f32 %v345, 0.0
    %v355 = vmax.f32 %v328, 0.0
    %v356 = vmax.f32 %v347, 0.0
    %v357 = vpack.c.bf16 %v351, %v349
    %v358 = vpack.c.bf16 %v352, %v350
    %v359 = vpack.c.bf16 %v355, %v353
    %v360 = vpack.c.bf16 %v356, %v354
    %v361 = vld [vmem:[#allocation10] sm:$0xf]
    %v362 = vld [vmem:[#allocation10 + $0x4] sm:$0xf]
    %v363 = vld [vmem:[#allocation10 + $0x8] sm:$0xf]
    %v364 = vld [vmem:[#allocation10 + $0xc] sm:$0xf]
    %v365 = vld [vmem:[#allocation10 + $0x10] sm:$0xf]
    %v366 = vld [vmem:[#allocation10 + $0x14] sm:$0xf]
    %v367 = vld [vmem:[#allocation10 + $0x18] sm:$0xf]
    %v368 = vld [vmem:[#allocation10 + $0x1c] sm:$0xf]
    %v369 = vld [vmem:[#allocation10 + $0x20] sm:$0xf]
    %v370 = vld [vmem:[#allocation10 + $0x24] sm:$0xf]
    %v371 = vld [vmem:[#allocation10 + $0x28] sm:$0xf]
    %v372 = vld [vmem:[#allocation10 + $0x2c] sm:$0xf]
    %v373 = vld [vmem:[#allocation10 + $0x30] sm:$0xf]
    %v374 = vld [vmem:[#allocation10 + $0x34] sm:$0xf]
    %v375 = vld [vmem:[#allocation10 + $0x38] sm:$0xf]
    %v376 = vld [vmem:[#allocation10 + $0x3c] sm:$0xf]
    %v377 = vld [vmem:[#allocation10 + $0x40] sm:$0xf]
    %v378 = vld [vmem:[#allocation10 + $0x44] sm:$0xf]
    %v379 = vld [vmem:[#allocation10 + $0x48] sm:$0xf]
    %v380 = vld [vmem:[#allocation10 + $0x4c] sm:$0xf]
    %v381 = vld [vmem:[#allocation10 + $0x50] sm:$0xf]
    %v382 = vld [vmem:[#allocation10 + $0x54] sm:$0xf]
    %v383 = vld [vmem:[#allocation10 + $0x58] sm:$0xf]
    %v384 = vld [vmem:[#allocation10 + $0x5c] sm:$0xf]
    %v385 = vld [vmem:[#allocation10 + $0x60] sm:$0xf]
    %v386 = vld [vmem:[#allocation10 + $0x64] sm:$0xf]
    %v387 = vld [vmem:[#allocation10 + $0x68] sm:$0xf]
    %v388 = vld [vmem:[#allocation10 + $0x6c] sm:$0xf]
    %v389 = vld [vmem:[#allocation10 + $0x70] sm:$0xf]
    %v390 = vld [vmem:[#allocation10 + $0x74] sm:$0xf]
    %v391 = vld [vmem:[#allocation10 + $0x78] sm:$0xf]
    %v392 = vld [vmem:[#allocation10 + $0x7c] sm:$0xf]
    %v425 = vunpack.c.l.b16 %v361
    %v426 = vunpack.c.l.b16 %v362
    %v427 = vunpack.c.l.b16 %v363
    %v428 = vunpack.c.l.b16 %v364
    %v429 = vunpack.c.l.b16 %v365
    %v430 = vunpack.c.l.b16 %v366
    %v431 = vunpack.c.l.b16 %v367
    %v432 = vunpack.c.l.b16 %v368
    %v433 = vunpack.c.l.b16 %v369
    %v434 = vunpack.c.l.b16 %v370
    %v435 = vunpack.c.l.b16 %v371
    %v436 = vunpack.c.l.b16 %v372
    %v437 = vunpack.c.l.b16 %v373
    %v438 = vunpack.c.l.b16 %v374
    %v439 = vunpack.c.l.b16 %v375
    %v440 = vunpack.c.l.b16 %v376
    %v441 = vunpack.c.l.b16 %v377
    %v442 = vunpack.c.l.b16 %v378
    %v443 = vunpack.c.l.b16 %v379
    %v444 = vunpack.c.l.b16 %v380
    %v445 = vunpack.c.l.b16 %v381
    %v446 = vunpack.c.l.b16 %v382
    %v447 = vunpack.c.l.b16 %v383
    %v448 = vunpack.c.l.b16 %v384
    %v449 = vunpack.c.l.b16 %v385
    %v450 = vunpack.c.l.b16 %v386
    %v451 = vunpack.c.l.b16 %v387
    %v452 = vunpack.c.l.b16 %v388
    %v453 = vunpack.c.l.b16 %v389
    %v454 = vunpack.c.l.b16 %v390
    %v455 = vunpack.c.l.b16 %v391
    %v456 = vunpack.c.l.b16 %v392
    %v457 = vpack.c.b16 %v426, %v425
    %v458 = vpack.c.b16 %v428, %v427
    %v459 = vpack.c.b16 %v430, %v429
    %v460 = vpack.c.b16 %v432, %v431
    %v461 = vpack.c.b16 %v434, %v433
    %v462 = vpack.c.b16 %v436, %v435
    %v463 = vpack.c.b16 %v438, %v437
    %v464 = vpack.c.b16 %v440, %v439
    %v465 = vpack.c.b16 %v442, %v441
    %v466 = vpack.c.b16 %v444, %v443
    %v467 = vpack.c.b16 %v446, %v445
    %v468 = vpack.c.b16 %v448, %v447
    %v469 = vpack.c.b16 %v450, %v449
    %v470 = vpack.c.b16 %v452, %v451
    %v471 = vpack.c.b16 %v454, %v453
    %v472 = vpack.c.b16 %v456, %v455
    %489 = vmatpush.bf16.msra.mxu0 %v464
    %490 = vmatpush.bf16.msra.mxu0 %v463
    %491 = vmatpush.bf16.msra.mxu0 %v462
    %492 = vmatpush.bf16.msra.mxu0 %v461
    %493 = vmatpush.bf16.msra.mxu0 %v460
    %494 = vmatpush.bf16.msra.mxu0 %v459
    %495 = vmatpush.bf16.msra.mxu0 %v458
    %496 = vmatpush.bf16.msra.mxu0 %v457
    %497 = vmatmul.bf16.gmra.mxu0 %v357
    %v498 = vpop.f32.mrf.mxu0
    %v499 = vadd.f32 0.0, %v498
    %v500 = vpop.f32.mrf.mxu0
    %v501 = vadd.f32 0.0, %v500
    %502 = vmatmul.bf16.gmra.mxu0 %v359
    %v503 = vpop.f32.mrf.mxu0
    %v504 = vadd.f32 0.0, %v503
    %v505 = vpop.f32.mrf.mxu0
    %v506 = vadd.f32 0.0, %v505
    %507 = vdwg.mxu0
    %508 = vmatpush.bf16.msra.mxu0 %v472
    %509 = vmatpush.bf16.msra.mxu0 %v471
    %510 = vmatpush.bf16.msra.mxu0 %v470
    %511 = vmatpush.bf16.msra.mxu0 %v469
    %512 = vmatpush.bf16.msra.mxu0 %v468
    %513 = vmatpush.bf16.msra.mxu0 %v467
    %514 = vmatpush.bf16.msra.mxu0 %v466
    %515 = vmatpush.bf16.msra.mxu0 %v465
    %516 = vmatmul.bf16.gmra.mxu0 %v358
    %v517 = vpop.f32.mrf.mxu0
    %v518 = vadd.f32 %v499, %v517
    %v519 = vpop.f32.mrf.mxu0
    %v520 = vadd.f32 %v501, %v519
    %521 = vmatmul.bf16.gmra.mxu0 %v360
    %v522 = vpop.f32.mrf.mxu0
    %v523 = vadd.f32 %v504, %v522
    %v524 = vpop.f32.mrf.mxu0
    %v525 = vadd.f32 %v506, %v524
    %526 = vdwg.mxu0
    // Predicated region
    $region50: #{tpu_custom_call.1} parent=1 // pred_check
      %p527 = pneg %p88
    $region51: #{tpu_custom_call.1} parent=1 // pred_check_branch
      %529 = sbr.rel (%p527) target = $region53
    $region52: #{tpu_custom_call.1} parent=1 // pred_region
      %v530 = vld [vmem:[%s6] sm:$0x1]
      %v532 = vperm.slane %v530, 0
      %v534 = vadd.f32 %v203, %v532
      %v535 = vadd.f32 %v204, %v532
      %v536 = vadd.f32 %v205, %v532
      %v537 = vadd.f32 %v206, %v532
      %v538 = vadd.f32 %v534, %v518
      %v539 = vadd.f32 %v535, %v520
      %v540 = vadd.f32 %v536, %v523
      %v541 = vadd.f32 %v537, %v525
      %542 = vst [vmem:[#allocation3] sm:$0xff] %v538
      %543 = vst [vmem:[#allocation3 + $0x8] sm:$0xff] %v539
      %544 = vst [vmem:[#allocation3 + $0x10] sm:$0xff] %v540
      %545 = vst [vmem:[#allocation3 + $0x18] sm:$0xff] %v541
    $region53: #{tpu_custom_call.1} parent=1 // pred_fallthru
      _
    %p546 = scmp.gt.s32.totalorder 0, 0
    // Predicated region
    $region54: #{tpu_custom_call.1} parent=1 // pred_check
      %p547 = pneg %p546
    $region55: #{tpu_custom_call.1} parent=1 // pred_check_branch
      %549 = sbr.rel (%p547) target = $region57
    $region56: #{tpu_custom_call.1} parent=1 // pred_region
      %v550 = vld [vmem:[#allocation3] sm:$0xff]
      %v551 = vld [vmem:[#allocation3 + $0x8] sm:$0xff]
      %v552 = vld [vmem:[#allocation3 + $0x10] sm:$0xff]
      %v553 = vld [vmem:[#allocation3 + $0x18] sm:$0xff]
      %v554 = vadd.f32 %v550, %v518
      %v555 = vadd.f32 %v551, %v520
      %v556 = vadd.f32 %v552, %v523
      %v557 = vadd.f32 %v553, %v525
      %558 = vst [vmem:[#allocation3] sm:$0xff] %v554
      %559 = vst [vmem:[#allocation3 + $0x8] sm:$0xff] %v555
      %560 = vst [vmem:[#allocation3 + $0x10] sm:$0xff] %v556
      %561 = vst [vmem:[#allocation3 + $0x18] sm:$0xff] %v557
    $region57: #{tpu_custom_call.1} parent=1 // pred_fallthru
      _
    // Predicated region
    $region58: #{tpu_custom_call.1} parent=1 // pred_check
      %p562 = pneg %p88
    $region59: #{tpu_custom_call.1} parent=1 // pred_check_branch
      %564 = sbr.rel (%p562) target = $region61
    $region60: #{tpu_custom_call.1} parent=1 // pred_region
      %v565 = vld [vmem:[#allocation3] sm:$0xff]
      %v566 = vld [vmem:[#allocation3 + $0x8] sm:$0xff]
      %v567 = vld [vmem:[#allocation3 + $0x10] sm:$0xff]
      %v568 = vld [vmem:[#allocation3 + $0x18] sm:$0xff]
      %569 = vst [vmem:[#allocation12] sm:$0xff] %v565
      %570 = vst [vmem:[#allocation12 + $0x8] sm:$0xff] %v566
      %571 = vst [vmem:[#allocation12 + $0x10] sm:$0xff] %v567
      %572 = vst [vmem:[#allocation12 + $0x18] sm:$0xff] %v568
    $region61: #{tpu_custom_call.1} parent=1 // pred_fallthru
      _
    // Predicated region
    $region62: #{tpu_custom_call.1} parent=1 // pred_check
      _
    $region63: #{tpu_custom_call.1} parent=1 // pred_check_branch
      %574 = sbr.rel (0) target = $region65
    $region64: #{tpu_custom_call.1} parent=1 // pred_region
      %576 = vsyncadd [#allocation6], 0
      %s577 = sshll.u32 [#allocation12], 4
      %s578 = int_to_ptr.vmem [resolvable:$true] %s577
      %s579 = sshll.u32 %s7, 4
      %s580 = int_to_ptr.hbm [resolvable:$true] %s579
      %585 = dma.vmem_to_hbm [thread:$0]  %s578, 512, %s580, [#allocation6], 128, 128, 8
    $region65: #{tpu_custom_call.1} parent=1 // pred_fallthru
      _
    // Predicated region
    $region66: #{tpu_custom_call.1} parent=1 // pred_check
      _
    $region67: #{tpu_custom_call.1} parent=1 // pred_check_branch
      %587 = sbr.rel (0) target = $region69
    $region68: #{tpu_custom_call.1} parent=1 // pred_region
      %589 = dma.done [#allocation6], 512
    $region69: #{tpu_custom_call.1} parent=1 // pred_fallthru
      _
    %590 = vsyncpa [#allocation5], 1
    %591 = vsyncpa [#allocation8], 1
    %592 = vsyncpa [#allocation11], 1
    %593 = vsyncpa [#allocation6], 1

</llo_original>
